<compile_context>
chip_gen: v6e
topology: v6e:2x2x1
jax: 0.10.0
libtpu: 0.0.40
codegen_flags: <defaults>
</compile_context>

<pallas_src>
import functools
import numpy as np
import jax
import jax.numpy as jnp
from jax import lax
from jax.experimental import pallas as pl
from jax.experimental.pallas import tpu as pltpu

EPS = 1e-5
SQRT2_INV = 0.7071067811865476


# ------------- exact (erf-based) GELU, in-kernel ----------------------------
# A&S 7.1.26 polynomial (|abs err| <= 1.5e-7): matches PyTorch's default nn.GELU in f32.
def _erf(x, approx_recip=False):
    a1, a2, a3, a4, a5 = 0.254829592, -0.284496736, 1.421413741, -1.453152027, 1.061405429
    p = 0.3275911
    ax = jnp.abs(x)
    denom = 1.0 + p * ax
    if approx_recip:
        t = pl.reciprocal(denom, approx=True)    # EUP slot, used only in perf mode
    else:
        t = 1.0 / denom
    poly = ((((a5 * t + a4) * t + a3) * t + a2) * t + a1) * t
    r = 1.0 - poly * jnp.exp(-ax * ax)
    return jnp.where(x >= 0, r, -r)


def _gelu_exact(x, approx_recip=False):
    return 0.5 * x * (1.0 + _erf(x * SQRT2_INV, approx_recip))


# ------------- fused kernel --------------------------------------------------
def _downsample_kernel(ph_ref, w_ref, bi0_ref, m1_ref, b1_ref, m2_ref, b2_ref, pm_ref,
                       o_ref, y_ref, *, th, rc, wo, c2, k, approx_recip):
    # ph_ref : (1, 4, ho+3, wo+3, c_in)  per-batch padded stride-2 phase slab (VMEM-resident,
    #          revisited across the row-tile grid axis => DMA'd once per batch).
    # w_ref  : (7, 7, c2)   depthwise taps, BN0 scale folded, plane-block channel order.
    # bi0_ref: (1, c2)      fused conv bias + BN0 bias (plane-block order).
    # m1_ref : (c2, hid)    1x1 weights (rows plane-block order, BN1 scale folded).
    # b1_ref : (1, hid)     BN1 bias.
    # m2_ref : (hid, c2)    1x1 weights (cols ORIGINAL order, BN2 scale folded).
    # b2_ref : (1, c2)      BN2 bias (original order).
    # pm_ref : (c2, c2)     0/1 permutation matrix: plane-block order -> original order.
    # o_ref  : (1, th*wo, c2) output token slab (original channel order).
    # y_ref  : VMEM scratch (th*wo, c2) f32: conv+BN output `y` in plane-block order.
    ti = pl.program_id(1)
    r_base = ti * th
    n_chunks = th // rc
    chunk_tok = rc * wo
    tok_aligned = (chunk_tok % 8 == 0)

    def chunk_body(q, carry):
        r0 = r_base + q * rc                       # first output row of this chunk
        acc = jnp.zeros((rc, wo, c2), jnp.float32)
        # 49-tap depthwise MAC.  14 (phase, kw) slabs per chunk; all per-kh shifts are
        # leading-dim (free) slices; both output planes are accumulated in one c2-wide acc.
        for ph_h in range(2):
            for kw in range(k):
                ph_w, sw = kw % 2, kw // 2
                p = ph_h * 2 + ph_w
                slab = ph_ref[0, p, pl.ds(r0, rc + 3), pl.ds(sw, wo), :]   # (rc+3, wo, c_in)
                slab = slab.astype(jnp.float32)
                slab2 = jnp.concatenate([slab, slab], axis=-1)             # (rc+3, wo, c2)
                for kh in range(ph_h, k, 2):
                    sh = kh // 2
                    acc = acc + slab2[sh:sh + rc] * w_ref[kh, kw, :]
        yb = acc.reshape(chunk_tok, c2) + bi0_ref[...]
        off = q * chunk_tok
        if tok_aligned and not isinstance(off, int):
            off = pl.multiple_of(off, 8)
        y_ref[pl.ds(off, chunk_tok), :] = yb
        return carry

    if n_chunks == 1:
        chunk_body(0, 0)
    else:
        lax.fori_loop(0, n_chunks, chunk_body, 0)

    # channel_mixer (1x1 conv MLP) + residual, on the full tile (MXU matmuls).
    y = y_ref[...]                                  # (th*wo, c2), plane-block order, f32
    md = m1_ref.dtype
    h = jnp.dot(y.astype(md), m1_ref[...], preferred_element_type=jnp.float32) + b1_ref[...]
    h = _gelu_exact(h, approx_recip)
    z = jnp.dot(h.astype(md), m2_ref[...], preferred_element_type=jnp.float32) + b2_ref[...]
    # map y back to original channel order with an exact f32 permutation matmul (MXU),
    # so the kernel writes final channel order and no host-side gather is needed.
    y_orig = jnp.dot(y, pm_ref[...], preferred_element_type=jnp.float32)
    o_ref[0, :, :] = (y_orig + z).astype(o_ref.dtype)


# ------------- tiling helpers -------------------------------------------------
def _pick_tile_rows(ho, wo, target_tokens):
    """Largest-ish divisor of ho whose token count is 8-aligned; prefer >=2 tiles (v7x)."""
    best, best_key = ho, None
    for th in range(1, ho + 1):
        if ho % th:
            continue
        tokens = th * wo
        if tokens % 8 != 0 and th != ho:     # keep the output block sublane-dim legal/aligned
            continue
        key = (0 if (ho // th) >= 2 else 1, abs(tokens - target_tokens))
        if best_key is None or key < best_key:
            best, best_key = th, key
    return best


def _pick_chunk_rows(th, wo, c2, vreg_budget=48):
    """Rows per MAC chunk so acc + duplicated slab + temps stay inside the vreg file."""
    w8 = -(-wo // 8)
    lg = -(-c2 // 128)
    best = 1
    for rc in range(1, th + 1):
        if th % rc:
            continue
        if (2 * rc + 3) * w8 * lg + 6 <= vreg_budget:
            best = rc
    return best


# ------------- full Downsample forward ---------------------------------------
def downsample_forward(x_nchw, p, *, matmul_dtype=jnp.float32, phase_dtype=None,
                       tile_rows=None, target_tokens=512, vreg_budget=48):
    """phase_dtype=jnp.bfloat16 + matmul_dtype=jnp.bfloat16 is the v6e/v7x perf mode."""
    x = jnp.transpose(x_nchw, (0, 2, 3, 1)).astype(jnp.float32)       # NCHW -> NHWC
    b, h, w, c_in = x.shape
    c2 = p['w_tm'].shape[0]
    hid = p['w1'].shape[0]
    assert c2 == 2 * c_in

    # kernel channel order (plane-block): j < c_in -> original o = 2j ; j >= c_in -> 2(j-c_in)+1
    orig_of = np.array([2 * j if j < c_in else 2 * (j - c_in) + 1 for j in range(c2)],
                       dtype=np.int32)

    # ---- fold BatchNorms into weights/biases (inference-mode running stats) ----
    sc0 = p['g0'] / jnp.sqrt(p['v0'] + EPS)
    bi0 = p['be0'] + sc0 * (p['b_tm'] - p['m0'])
    w_all = jnp.transpose(p['w_tm'][:, 0, :, :], (1, 2, 0)) * sc0[None, None, :]  # (7,7,c2)
    w_tap = w_all[:, :, orig_of]                                  # plane-block order taps
    bi0p = bi0[orig_of].reshape(1, c2)

    sc1 = p['g1'] / jnp.sqrt(p['v1'] + EPS)
    sc2 = p['g2'] / jnp.sqrt(p['v2'] + EPS)
    w1m = (p['w1'][:, :, 0, 0].T * sc1[None, :])[orig_of, :].astype(matmul_dtype)  # (c2,hid)
    w2m = (p['w2'][:, :, 0, 0].T * sc2[None, :]).astype(matmul_dtype)              # (hid,c2)
    b1 = (p['be1'] - sc1 * p['m1']).reshape(1, hid)
    b2 = (p['be2'] - sc2 * p['m2']).reshape(1, c2)
    pm_np = np.zeros((c2, c2), np.float32)
    pm_np[np.arange(c2), orig_of] = 1.0
    pm = jnp.asarray(pm_np)                                        # plane-block -> original

    # ---- pad + 4-phase stride-2 split (one fused XLA copy over the C_in input) ----
    # TODO(synk): in-kernel strided DMA + halo masking would remove this host pass entirely.
    ho = (h - 1) // 2 + 1
    wo = (w - 1) // 2 + 1
    hp, wp = 2 * (ho + 3), 2 * (wo + 3)
    xp = jnp.pad(x, ((0, 0), (3, hp - h - 3), (3, wp - w - 3), (0, 0)))
    phases = jnp.stack([xp[:, ph::2, pw::2, :] for ph in (0, 1) for pw in (0, 1)],
                       axis=1)                                     # (B, 4, ho+3, wo+3, C_in)
    if phase_dtype is not None:
        phases = phases.astype(phase_dtype)                       # bf16 halves input HBM/DMA

    # ---- tiling: grid over (batch, output-row tiles) ----
    th = tile_rows if tile_rows is not None else _pick_tile_rows(ho, wo, target_tokens)
    assert ho % th == 0, f"tile_rows={th} must divide ho={ho}"
    assert (th * wo) % 8 == 0 or th == ho, "tile token count must be 8-aligned (or th==ho)"
    n_t = ho // th
    rc = _pick_chunk_rows(th, wo, c2, vreg_budget)

    kern = functools.partial(_downsample_kernel, th=th, rc=rc, wo=wo, c2=c2, k=7,
                             approx_recip=(matmul_dtype != jnp.float32))

    weights = (w_tap, bi0p, w1m, b1, w2m, b2, pm)
    w_bytes = int(sum(int(a.size) * a.dtype.itemsize for a in weights))
    blk_in = 4 * (ho + 3) * (wo + 3) * c_in * phases.dtype.itemsize
    blk_out = th * wo * c2 * 4
    scratch_bytes = th * wo * c2 * 4
    need = 2 * blk_in + 2 * blk_out + 2 * w_bytes + scratch_bytes + (8 << 20)
    try:
        cap = int(pltpu.get_tpu_info().vmem_capacity_bytes)        # 64 MiB on v7x, 128 MiB else
    except Exception:
        cap = 64 << 20
    vmem_limit = int(min(max(need, 32 << 20), int(cap * 0.9)))     # reduce tile_rows if tight

    n_tok = b * ho * wo
    cost = pl.CostEstimate(
        flops=int(2 * 49 * n_tok * c2 + 4 * n_tok * c2 * hid + 2 * n_tok * c2 * c2),
        transcendentals=int(n_tok * hid),
        bytes_accessed=int(phases.size * phases.dtype.itemsize + n_tok * c2 * 4 + w_bytes))

    out_flat = pl.pallas_call(
        kern,
        out_shape=jax.ShapeDtypeStruct((b, ho * wo, c2), jnp.float32),
        grid=(b, n_t),
        in_specs=[
            pl.BlockSpec((1, 4, ho + 3, wo + 3, c_in), lambda bi, ti: (bi, 0, 0, 0, 0)),
            pl.BlockSpec((7, 7, c2), lambda bi, ti: (0, 0, 0)),
            pl.BlockSpec((1, c2), lambda bi, ti: (0, 0)),
            pl.BlockSpec((c2, hid), lambda bi, ti: (0, 0)),
            pl.BlockSpec((1, hid), lambda bi, ti: (0, 0)),
            pl.BlockSpec((hid, c2), lambda bi, ti: (0, 0)),
            pl.BlockSpec((1, c2), lambda bi, ti: (0, 0)),
            pl.BlockSpec((c2, c2), lambda bi, ti: (0, 0)),
        ],
        out_specs=pl.BlockSpec((1, th * wo, c2), lambda bi, ti: (bi, ti, 0)),
        scratch_shapes=[pltpu.VMEM((th * wo, c2), jnp.float32)],
        compiler_params=pltpu.CompilerParams(
            dimension_semantics=("parallel", "parallel"),
            vmem_limit_bytes=vmem_limit),
        cost_estimate=cost,
    )(phases, *weights)

    out = out_flat.reshape(b, ho, wo, c2)                          # free reshape
    return jnp.transpose(out, (0, 3, 1, 2))                        # NHWC -> NCHW


# ------------- pure-JAX reference (for correctness check) --------------------
def _bn_nchw(x, g, b, m, v):
    inv = g / jnp.sqrt(v + EPS)
    return x * inv[None, :, None, None] + (b - m * inv)[None, :, None, None]


def downsample_reference(x_nchw, p, c_in):
    y = jax.lax.conv_general_dilated(
        x_nchw, p['w_tm'], window_strides=(2, 2), padding=((3, 3), (3, 3)),
        dimension_numbers=('NCHW', 'OIHW', 'NCHW'), feature_group_count=c_in)
    y = y + p['b_tm'][None, :, None, None]
    y = _bn_nchw(y, p['g0'], p['be0'], p['m0'], p['v0'])
    h = jnp.einsum('nchw,kc->nkhw', y, p['w1'][:, :, 0, 0])
    h = _bn_nchw(h, p['g1'], p['be1'], p['m1'], p['v1'])
    h = jax.nn.gelu(h, approximate=False)
    z = jnp.einsum('nkhw,ck->nchw', h, p['w2'][:, :, 0, 0])
    z = _bn_nchw(z, p['g2'], p['be2'], p['m2'], p['v2'])
    return y + z


if __name__ == "__main__":
    B, C_IN, H, W = 2, 4, 16, 16
    MLP_RATIO = 2
    C2 = C_IN * 2
    HID = C2 * MLP_RATIO
    f32 = jnp.float32

    key = jax.random.PRNGKey(0)
    ks = jax.random.split(key, 20)
    params = {
        # token_mixer: Conv2d(C_IN, C2, 7, stride=2, pad=3, groups=C_IN) (has bias)
        'w_tm': 0.15 * jax.random.normal(ks[0], (C2, 1, 7, 7), f32),
        'b_tm': 0.10 * jax.random.normal(ks[1], (C2,), f32),
        # self.norm = BatchNorm2d(C2)   (inference-mode running stats)
        'g0': 1.0 + 0.1 * jax.random.normal(ks[2], (C2,), f32),
        'be0': 0.1 * jax.random.normal(ks[3], (C2,), f32),
        'm0': 0.1 * jax.random.normal(ks[4], (C2,), f32),
        'v0': jax.random.uniform(ks[5], (C2,), f32, 0.5, 1.5),
        # channel_mixer ConvNorm(C2 -> HID, 1x1, bias=False) + BN(HID)
        'w1': 0.3 * jax.random.normal(ks[6], (HID, C2, 1, 1), f32),
        'g1': 1.0 + 0.1 * jax.random.normal(ks[7], (HID,), f32),
        'be1': 0.1 * jax.random.normal(ks[8], (HID,), f32),
        'm1': 0.1 * jax.random.normal(ks[9], (HID,), f32),
        'v1': jax.random.uniform(ks[10], (HID,), f32, 0.5, 1.5),
        # channel_mixer ConvNorm(HID -> C2, 1x1, bias=False) + BN(C2)
        'w2': 0.3 * jax.random.normal(ks[11], (C2, HID, 1, 1), f32),
        'g2': 1.0 + 0.1 * jax.random.normal(ks[12], (C2,), f32),
        'be2': 0.1 * jax.random.normal(ks[13], (C2,), f32),
        'm2': 0.1 * jax.random.normal(ks[14], (C2,), f32),
        'v2': jax.random.uniform(ks[15], (C2,), f32, 0.5, 1.5),
    }
    x = jax.random.normal(ks[16], (B, C_IN, H, W), f32)

    ref = jax.block_until_ready(downsample_reference(x, params, C_IN))

    # 1) exact f32 path (default tiling)
    out = jax.block_until_ready(downsample_forward(x, params))
    np.testing.assert_allclose(np.asarray(out), np.asarray(ref), rtol=1e-4, atol=1e-4)

    # 2) perf mode (v6e/v7x): bf16 MXU operands + bf16 phase storage + approx-EUP reciprocal,
    #    multi-tile row grid.  (On v5e keep phase_dtype=None: f32 VPU path, bf16 MXU only.)
    out_fast = jax.block_until_ready(
        downsample_forward(x, params, matmul_dtype=jnp.bfloat16,
                           phase_dtype=jnp.bfloat16, tile_rows=2))
    np.testing.assert_allclose(np.asarray(out_fast), np.asarray(ref), rtol=8e-2, atol=8e-2)

    print("KERNEL_OK")
</pallas_src>

<mosaic_0001>
module attributes {stable_mosaic.version = 11 : i64} {
  func.func @_downsample_kernel(%arg0: i32, %arg1: i32, %arg2: memref<1x4x11x11x4xf32, #tpu.memory_space<vmem>>, %arg3: memref<7x7x8xf32, #tpu.memory_space<vmem>>, %arg4: memref<1x8xf32, #tpu.memory_space<vmem>>, %arg5: memref<8x16xf32, #tpu.memory_space<vmem>>, %arg6: memref<1x16xf32, #tpu.memory_space<vmem>>, %arg7: memref<16x8xf32, #tpu.memory_space<vmem>>, %arg8: memref<1x8xf32, #tpu.memory_space<vmem>>, %arg9: memref<8x8xf32, #tpu.memory_space<vmem>>, %arg10: memref<1x32x8xf32, #tpu.memory_space<vmem>>, %arg11: memref<32x8xf32, #tpu.memory_space<vmem>>) attributes {dimension_semantics = [#tpu.dimension_semantics<parallel>, #tpu.dimension_semantics<parallel>], iteration_bounds = array<i64: 2, 2>, scalar_prefetch = 0 : i64, scratch_operands = 1 : i64, tpu.core_type = #tpu.core_type<tc>, window_params = [{transform_indices = @transform_0, window_bounds = array<i64: 1, 4, 11, 11, 4>}, {pipeline_mode = #tpu.pipeline_mode<synchronous>, transform_indices = @transform_1, window_bounds = array<i64: 7, 7, 8>}, {pipeline_mode = #tpu.pipeline_mode<synchronous>, transform_indices = @transform_2, window_bounds = array<i64: 1, 8>}, {pipeline_mode = #tpu.pipeline_mode<synchronous>, transform_indices = @transform_3, window_bounds = array<i64: 8, 16>}, {pipeline_mode = #tpu.pipeline_mode<synchronous>, transform_indices = @transform_4, window_bounds = array<i64: 1, 16>}, {pipeline_mode = #tpu.pipeline_mode<synchronous>, transform_indices = @transform_5, window_bounds = array<i64: 16, 8>}, {pipeline_mode = #tpu.pipeline_mode<synchronous>, transform_indices = @transform_6, window_bounds = array<i64: 1, 8>}, {pipeline_mode = #tpu.pipeline_mode<synchronous>, transform_indices = @transform_7, window_bounds = array<i64: 8, 8>}, {transform_indices = @transform_8, window_bounds = array<i64: 1, 32, 8>}]} {
    %c4_i32 = arith.constant 4 : i32
    %0 = arith.muli %arg1, %c4_i32 : i32
    %c0_i32 = arith.constant 0 : i32
    %1 = arith.addi %0, %c0_i32 : i32
    %cst = arith.constant 0.000000e+00 : f32
    %2 = vector.broadcast %cst : f32 to vector<4x8x8xf32>
    %c0 = arith.constant 0 : index
    %c0_0 = arith.constant 0 : index
    %3 = arith.index_cast %1 : i32 to index
    %c0_1 = arith.constant 0 : index
    %c0_2 = arith.constant 0 : index
    %4 = vector.load %arg2[%c0, %c0_0, %3, %c0_1, %c0_2] : memref<1x4x11x11x4xf32, #tpu.memory_space<vmem>>, vector<1x1x7x8x4xf32>
    %5 = vector.shape_cast %4 : vector<1x1x7x8x4xf32> to vector<7x8x4xf32>
    %6 = tpu.concatenate %5, %5 in 2 : vector<7x8x4xf32>, vector<7x8x4xf32> -> vector<7x8x8xf32>
    %7 = vector.extract_strided_slice %6 {offsets = [0, 0, 0], sizes = [4, 8, 8], strides = [1, 1, 1]} : vector<7x8x8xf32> to vector<4x8x8xf32>
    %c0_3 = arith.constant 0 : index
    %c0_4 = arith.constant 0 : index
    %c0_5 = arith.constant 0 : index
    %8 = vector.load %arg3[%c0_3, %c0_4, %c0_5] : memref<7x7x8xf32, #tpu.memory_space<vmem>>, vector<1x1x8xf32>
    %9 = vector.shape_cast %8 : vector<1x1x8xf32> to vector<8xf32>
    %10 = vector.shape_cast %9 : vector<8xf32> to vector<1x1x8xf32>
    %11 = vector.broadcast %10 : vector<1x1x8xf32> to vector<4x8x8xf32>
    %12 = arith.mulf %7, %11 : vector<4x8x8xf32>
    %13 = arith.addf %2, %12 : vector<4x8x8xf32>
    %14 = vector.extract_strided_slice %6 {offsets = [1, 0, 0], sizes = [4, 8, 8], strides = [1, 1, 1]} : vector<7x8x8xf32> to vector<4x8x8xf32>
    %c2 = arith.constant 2 : index
    %c0_6 = arith.constant 0 : index
    %c0_7 = arith.constant 0 : index
    %15 = vector.load %arg3[%c2, %c0_6, %c0_7] : memref<7x7x8xf32, #tpu.memory_space<vmem>>, vector<1x1x8xf32>
    %16 = vector.shape_cast %15 : vector<1x1x8xf32> to vector<8xf32>
    %17 = vector.shape_cast %16 : vector<8xf32> to vector<1x1x8xf32>
    %18 = vector.broadcast %17 : vector<1x1x8xf32> to vector<4x8x8xf32>
    %19 = arith.mulf %14, %18 : vector<4x8x8xf32>
    %20 = arith.addf %13, %19 : vector<4x8x8xf32>
    %21 = vector.extract_strided_slice %6 {offsets = [2, 0, 0], sizes = [4, 8, 8], strides = [1, 1, 1]} : vector<7x8x8xf32> to vector<4x8x8xf32>
    %c4 = arith.constant 4 : index
    %c0_8 = arith.constant 0 : index
    %c0_9 = arith.constant 0 : index
    %22 = vector.load %arg3[%c4, %c0_8, %c0_9] : memref<7x7x8xf32, #tpu.memory_space<vmem>>, vector<1x1x8xf32>
    %23 = vector.shape_cast %22 : vector<1x1x8xf32> to vector<8xf32>
    %24 = vector.shape_cast %23 : vector<8xf32> to vector<1x1x8xf32>
    %25 = vector.broadcast %24 : vector<1x1x8xf32> to vector<4x8x8xf32>
    %26 = arith.mulf %21, %25 : vector<4x8x8xf32>
    %27 = arith.addf %20, %26 : vector<4x8x8xf32>
    %28 = vector.extract_strided_slice %6 {offsets = [3, 0, 0], sizes = [4, 8, 8], strides = [1, 1, 1]} : vector<7x8x8xf32> to vector<4x8x8xf32>
    %c6 = arith.constant 6 : index
    %c0_10 = arith.constant 0 : index
    %c0_11 = arith.constant 0 : index
    %29 = vector.load %arg3[%c6, %c0_10, %c0_11] : memref<7x7x8xf32, #tpu.memory_space<vmem>>, vector<1x1x8xf32>
    %30 = vector.shape_cast %29 : vector<1x1x8xf32> to vector<8xf32>
    %31 = vector.shape_cast %30 : vector<8xf32> to vector<1x1x8xf32>
    %32 = vector.broadcast %31 : vector<1x1x8xf32> to vector<4x8x8xf32>
    %33 = arith.mulf %28, %32 : vector<4x8x8xf32>
    %34 = arith.addf %27, %33 : vector<4x8x8xf32>
    %c0_12 = arith.constant 0 : index
    %c1 = arith.constant 1 : index
    %35 = arith.index_cast %1 : i32 to index
    %c0_13 = arith.constant 0 : index
    %c0_14 = arith.constant 0 : index
    %36 = vector.load %arg2[%c0_12, %c1, %35, %c0_13, %c0_14] : memref<1x4x11x11x4xf32, #tpu.memory_space<vmem>>, vector<1x1x7x8x4xf32>
    %37 = vector.shape_cast %36 : vector<1x1x7x8x4xf32> to vector<7x8x4xf32>
    %38 = tpu.concatenate %37, %37 in 2 : vector<7x8x4xf32>, vector<7x8x4xf32> -> vector<7x8x8xf32>
    %39 = vector.extract_strided_slice %38 {offsets = [0, 0, 0], sizes = [4, 8, 8], strides = [1, 1, 1]} : vector<7x8x8xf32> to vector<4x8x8xf32>
    %c0_15 = arith.constant 0 : index
    %c1_16 = arith.constant 1 : index
    %c0_17 = arith.constant 0 : index
    %40 = vector.load %arg3[%c0_15, %c1_16, %c0_17] : memref<7x7x8xf32, #tpu.memory_space<vmem>>, vector<1x1x8xf32>
    %41 = vector.shape_cast %40 : vector<1x1x8xf32> to vector<8xf32>
    %42 = vector.shape_cast %41 : vector<8xf32> to vector<1x1x8xf32>
    %43 = vector.broadcast %42 : vector<1x1x8xf32> to vector<4x8x8xf32>
    %44 = arith.mulf %39, %43 : vector<4x8x8xf32>
    %45 = arith.addf %34, %44 : vector<4x8x8xf32>
    %46 = vector.extract_strided_slice %38 {offsets = [1, 0, 0], sizes = [4, 8, 8], strides = [1, 1, 1]} : vector<7x8x8xf32> to vector<4x8x8xf32>
    %c2_18 = arith.constant 2 : index
    %c1_19 = arith.constant 1 : index
    %c0_20 = arith.constant 0 : index
    %47 = vector.load %arg3[%c2_18, %c1_19, %c0_20] : memref<7x7x8xf32, #tpu.memory_space<vmem>>, vector<1x1x8xf32>
    %48 = vector.shape_cast %47 : vector<1x1x8xf32> to vector<8xf32>
    %49 = vector.shape_cast %48 : vector<8xf32> to vector<1x1x8xf32>
    %50 = vector.broadcast %49 : vector<1x1x8xf32> to vector<4x8x8xf32>
    %51 = arith.mulf %46, %50 : vector<4x8x8xf32>
    %52 = arith.addf %45, %51 : vector<4x8x8xf32>
    %53 = vector.extract_strided_slice %38 {offsets = [2, 0, 0], sizes = [4, 8, 8], strides = [1, 1, 1]} : vector<7x8x8xf32> to vector<4x8x8xf32>
    %c4_21 = arith.constant 4 : index
    %c1_22 = arith.constant 1 : index
    %c0_23 = arith.constant 0 : index
    %54 = vector.load %arg3[%c4_21, %c1_22, %c0_23] : memref<7x7x8xf32, #tpu.memory_space<vmem>>, vector<1x1x8xf32>
    %55 = vector.shape_cast %54 : vector<1x1x8xf32> to vector<8xf32>
    %56 = vector.shape_cast %55 : vector<8xf32> to vector<1x1x8xf32>
    %57 = vector.broadcast %56 : vector<1x1x8xf32> to vector<4x8x8xf32>
    %58 = arith.mulf %53, %57 : vector<4x8x8xf32>
    %59 = arith.addf %52, %58 : vector<4x8x8xf32>
    %60 = vector.extract_strided_slice %38 {offsets = [3, 0, 0], sizes = [4, 8, 8], strides = [1, 1, 1]} : vector<7x8x8xf32> to vector<4x8x8xf32>
    %c6_24 = arith.constant 6 : index
    %c1_25 = arith.constant 1 : index
    %c0_26 = arith.constant 0 : index
    %61 = vector.load %arg3[%c6_24, %c1_25, %c0_26] : memref<7x7x8xf32, #tpu.memory_space<vmem>>, vector<1x1x8xf32>
    %62 = vector.shape_cast %61 : vector<1x1x8xf32> to vector<8xf32>
    %63 = vector.shape_cast %62 : vector<8xf32> to vector<1x1x8xf32>
    %64 = vector.broadcast %63 : vector<1x1x8xf32> to vector<4x8x8xf32>
    %65 = arith.mulf %60, %64 : vector<4x8x8xf32>
    %66 = arith.addf %59, %65 : vector<4x8x8xf32>
    %c0_27 = arith.constant 0 : index
    %c0_28 = arith.constant 0 : index
    %67 = arith.index_cast %1 : i32 to index
    %c1_29 = arith.constant 1 : index
    %c0_30 = arith.constant 0 : index
    %68 = vector.load %arg2[%c0_27, %c0_28, %67, %c1_29, %c0_30] : memref<1x4x11x11x4xf32, #tpu.memory_space<vmem>>, vector<1x1x7x8x4xf32>
    %69 = vector.shape_cast %68 : vector<1x1x7x8x4xf32> to vector<7x8x4xf32>
    %70 = tpu.concatenate %69, %69 in 2 : vector<7x8x4xf32>, vector<7x8x4xf32> -> vector<7x8x8xf32>
    %71 = vector.extract_strided_slice %70 {offsets = [0, 0, 0], sizes = [4, 8, 8], strides = [1, 1, 1]} : vector<7x8x8xf32> to vector<4x8x8xf32>
    %c0_31 = arith.constant 0 : index
    %c2_32 = arith.constant 2 : index
    %c0_33 = arith.constant 0 : index
    %72 = vector.load %arg3[%c0_31, %c2_32, %c0_33] : memref<7x7x8xf32, #tpu.memory_space<vmem>>, vector<1x1x8xf32>
    %73 = vector.shape_cast %72 : vector<1x1x8xf32> to vector<8xf32>
    %74 = vector.shape_cast %73 : vector<8xf32> to vector<1x1x8xf32>
    %75 = vector.broadcast %74 : vector<1x1x8xf32> to vector<4x8x8xf32>
    %76 = arith.mulf %71, %75 : vector<4x8x8xf32>
    %77 = arith.addf %66, %76 : vector<4x8x8xf32>
    %78 = vector.extract_strided_slice %70 {offsets = [1, 0, 0], sizes = [4, 8, 8], strides = [1, 1, 1]} : vector<7x8x8xf32> to vector<4x8x8xf32>
    %c2_34 = arith.constant 2 : index
    %c2_35 = arith.constant 2 : index
    %c0_36 = arith.constant 0 : index
    %79 = vector.load %arg3[%c2_34, %c2_35, %c0_36] : memref<7x7x8xf32, #tpu.memory_space<vmem>>, vector<1x1x8xf32>
    %80 = vector.shape_cast %79 : vector<1x1x8xf32> to vector<8xf32>
    %81 = vector.shape_cast %80 : vector<8xf32> to vector<1x1x8xf32>
    %82 = vector.broadcast %81 : vector<1x1x8xf32> to vector<4x8x8xf32>
    %83 = arith.mulf %78, %82 : vector<4x8x8xf32>
    %84 = arith.addf %77, %83 : vector<4x8x8xf32>
    %85 = vector.extract_strided_slice %70 {offsets = [2, 0, 0], sizes = [4, 8, 8], strides = [1, 1, 1]} : vector<7x8x8xf32> to vector<4x8x8xf32>
    %c4_37 = arith.constant 4 : index
    %c2_38 = arith.constant 2 : index
    %c0_39 = arith.constant 0 : index
    %86 = vector.load %arg3[%c4_37, %c2_38, %c0_39] : memref<7x7x8xf32, #tpu.memory_space<vmem>>, vector<1x1x8xf32>
    %87 = vector.shape_cast %86 : vector<1x1x8xf32> to vector<8xf32>
    %88 = vector.shape_cast %87 : vector<8xf32> to vector<1x1x8xf32>
    %89 = vector.broadcast %88 : vector<1x1x8xf32> to vector<4x8x8xf32>
    %90 = arith.mulf %85, %89 : vector<4x8x8xf32>
    %91 = arith.addf %84, %90 : vector<4x8x8xf32>
    %92 = vector.extract_strided_slice %70 {offsets = [3, 0, 0], sizes = [4, 8, 8], strides = [1, 1, 1]} : vector<7x8x8xf32> to vector<4x8x8xf32>
    %c6_40 = arith.constant 6 : index
    %c2_41 = arith.constant 2 : index
    %c0_42 = arith.constant 0 : index
    %93 = vector.load %arg3[%c6_40, %c2_41, %c0_42] : memref<7x7x8xf32, #tpu.memory_space<vmem>>, vector<1x1x8xf32>
    %94 = vector.shape_cast %93 : vector<1x1x8xf32> to vector<8xf32>
    %95 = vector.shape_cast %94 : vector<8xf32> to vector<1x1x8xf32>
    %96 = vector.broadcast %95 : vector<1x1x8xf32> to vector<4x8x8xf32>
    %97 = arith.mulf %92, %96 : vector<4x8x8xf32>
    %98 = arith.addf %91, %97 : vector<4x8x8xf32>
    %c0_43 = arith.constant 0 : index
    %c1_44 = arith.constant 1 : index
    %99 = arith.index_cast %1 : i32 to index
    %c1_45 = arith.constant 1 : index
    %c0_46 = arith.constant 0 : index
    %100 = vector.load %arg2[%c0_43, %c1_44, %99, %c1_45, %c0_46] : memref<1x4x11x11x4xf32, #tpu.memory_space<vmem>>, vector<1x1x7x8x4xf32>
    %101 = vector.shape_cast %100 : vector<1x1x7x8x4xf32> to vector<7x8x4xf32>
    %102 = tpu.concatenate %101, %101 in 2 : vector<7x8x4xf32>, vector<7x8x4xf32> -> vector<7x8x8xf32>
    %103 = vector.extract_strided_slice %102 {offsets = [0, 0, 0], sizes = [4, 8, 8], strides = [1, 1, 1]} : vector<7x8x8xf32> to vector<4x8x8xf32>
    %c0_47 = arith.constant 0 : index
    %c3 = arith.constant 3 : index
    %c0_48 = arith.constant 0 : index
    %104 = vector.load %arg3[%c0_47, %c3, %c0_48] : memref<7x7x8xf32, #tpu.memory_space<vmem>>, vector<1x1x8xf32>
    %105 = vector.shape_cast %104 : vector<1x1x8xf32> to vector<8xf32>
    %106 = vector.shape_cast %105 : vector<8xf32> to vector<1x1x8xf32>
    %107 = vector.broadcast %106 : vector<1x1x8xf32> to vector<4x8x8xf32>
    %108 = arith.mulf %103, %107 : vector<4x8x8xf32>
    %109 = arith.addf %98, %108 : vector<4x8x8xf32>
    %110 = vector.extract_strided_slice %102 {offsets = [1, 0, 0], sizes = [4, 8, 8], strides = [1, 1, 1]} : vector<7x8x8xf32> to vector<4x8x8xf32>
    %c2_49 = arith.constant 2 : index
    %c3_50 = arith.constant 3 : index
    %c0_51 = arith.constant 0 : index
    %111 = vector.load %arg3[%c2_49, %c3_50, %c0_51] : memref<7x7x8xf32, #tpu.memory_space<vmem>>, vector<1x1x8xf32>
    %112 = vector.shape_cast %111 : vector<1x1x8xf32> to vector<8xf32>
    %113 = vector.shape_cast %112 : vector<8xf32> to vector<1x1x8xf32>
    %114 = vector.broadcast %113 : vector<1x1x8xf32> to vector<4x8x8xf32>
    %115 = arith.mulf %110, %114 : vector<4x8x8xf32>
    %116 = arith.addf %109, %115 : vector<4x8x8xf32>
    %117 = vector.extract_strided_slice %102 {offsets = [2, 0, 0], sizes = [4, 8, 8], strides = [1, 1, 1]} : vector<7x8x8xf32> to vector<4x8x8xf32>
    %c4_52 = arith.constant 4 : index
    %c3_53 = arith.constant 3 : index
    %c0_54 = arith.constant 0 : index
    %118 = vector.load %arg3[%c4_52, %c3_53, %c0_54] : memref<7x7x8xf32, #tpu.memory_space<vmem>>, vector<1x1x8xf32>
    %119 = vector.shape_cast %118 : vector<1x1x8xf32> to vector<8xf32>
    %120 = vector.shape_cast %119 : vector<8xf32> to vector<1x1x8xf32>
    %121 = vector.broadcast %120 : vector<1x1x8xf32> to vector<4x8x8xf32>
    %122 = arith.mulf %117, %121 : vector<4x8x8xf32>
    %123 = arith.addf %116, %122 : vector<4x8x8xf32>
    %124 = vector.extract_strided_slice %102 {offsets = [3, 0, 0], sizes = [4, 8, 8], strides = [1, 1, 1]} : vector<7x8x8xf32> to vector<4x8x8xf32>
    %c6_55 = arith.constant 6 : index
    %c3_56 = arith.constant 3 : index
    %c0_57 = arith.constant 0 : index
    %125 = vector.load %arg3[%c6_55, %c3_56, %c0_57] : memref<7x7x8xf32, #tpu.memory_space<vmem>>, vector<1x1x8xf32>
    %126 = vector.shape_cast %125 : vector<1x1x8xf32> to vector<8xf32>
    %127 = vector.shape_cast %126 : vector<8xf32> to vector<1x1x8xf32>
    %128 = vector.broadcast %127 : vector<1x1x8xf32> to vector<4x8x8xf32>
    %129 = arith.mulf %124, %128 : vector<4x8x8xf32>
    %130 = arith.addf %123, %129 : vector<4x8x8xf32>
    %c0_58 = arith.constant 0 : index
    %c0_59 = arith.constant 0 : index
    %131 = arith.index_cast %1 : i32 to index
    %c2_60 = arith.constant 2 : index
    %c0_61 = arith.constant 0 : index
    %132 = vector.load %arg2[%c0_58, %c0_59, %131, %c2_60, %c0_61] : memref<1x4x11x11x4xf32, #tpu.memory_space<vmem>>, vector<1x1x7x8x4xf32>
    %133 = vector.shape_cast %132 : vector<1x1x7x8x4xf32> to vector<7x8x4xf32>
    %134 = tpu.concatenate %133, %133 in 2 : vector<7x8x4xf32>, vector<7x8x4xf32> -> vector<7x8x8xf32>
    %135 = vector.extract_strided_slice %134 {offsets = [0, 0, 0], sizes = [4, 8, 8], strides = [1, 1, 1]} : vector<7x8x8xf32> to vector<4x8x8xf32>
    %c0_62 = arith.constant 0 : index
    %c4_63 = arith.constant 4 : index
    %c0_64 = arith.constant 0 : index
    %136 = vector.load %arg3[%c0_62, %c4_63, %c0_64] : memref<7x7x8xf32, #tpu.memory_space<vmem>>, vector<1x1x8xf32>
    %137 = vector.shape_cast %136 : vector<1x1x8xf32> to vector<8xf32>
    %138 = vector.shape_cast %137 : vector<8xf32> to vector<1x1x8xf32>
    %139 = vector.broadcast %138 : vector<1x1x8xf32> to vector<4x8x8xf32>
    %140 = arith.mulf %135, %139 : vector<4x8x8xf32>
    %141 = arith.addf %130, %140 : vector<4x8x8xf32>
    %142 = vector.extract_strided_slice %134 {offsets = [1, 0, 0], sizes = [4, 8, 8], strides = [1, 1, 1]} : vector<7x8x8xf32> to vector<4x8x8xf32>
    %c2_65 = arith.constant 2 : index
    %c4_66 = arith.constant 4 : index
    %c0_67 = arith.constant 0 : index
    %143 = vector.load %arg3[%c2_65, %c4_66, %c0_67] : memref<7x7x8xf32, #tpu.memory_space<vmem>>, vector<1x1x8xf32>
    %144 = vector.shape_cast %143 : vector<1x1x8xf32> to vector<8xf32>
    %145 = vector.shape_cast %144 : vector<8xf32> to vector<1x1x8xf32>
    %146 = vector.broadcast %145 : vector<1x1x8xf32> to vector<4x8x8xf32>
    %147 = arith.mulf %142, %146 : vector<4x8x8xf32>
    %148 = arith.addf %141, %147 : vector<4x8x8xf32>
    %149 = vector.extract_strided_slice %134 {offsets = [2, 0, 0], sizes = [4, 8, 8], strides = [1, 1, 1]} : vector<7x8x8xf32> to vector<4x8x8xf32>
    %c4_68 = arith.constant 4 : index
    %c4_69 = arith.constant 4 : index
    %c0_70 = arith.constant 0 : index
    %150 = vector.load %arg3[%c4_68, %c4_69, %c0_70] : memref<7x7x8xf32, #tpu.memory_space<vmem>>, vector<1x1x8xf32>
    %151 = vector.shape_cast %150 : vector<1x1x8xf32> to vector<8xf32>
    %152 = vector.shape_cast %151 : vector<8xf32> to vector<1x1x8xf32>
    %153 = vector.broadcast %152 : vector<1x1x8xf32> to vector<4x8x8xf32>
    %154 = arith.mulf %149, %153 : vector<4x8x8xf32>
    %155 = arith.addf %148, %154 : vector<4x8x8xf32>
    %156 = vector.extract_strided_slice %134 {offsets = [3, 0, 0], sizes = [4, 8, 8], strides = [1, 1, 1]} : vector<7x8x8xf32> to vector<4x8x8xf32>
    %c6_71 = arith.constant 6 : index
    %c4_72 = arith.constant 4 : index
    %c0_73 = arith.constant 0 : index
    %157 = vector.load %arg3[%c6_71, %c4_72, %c0_73] : memref<7x7x8xf32, #tpu.memory_space<vmem>>, vector<1x1x8xf32>
    %158 = vector.shape_cast %157 : vector<1x1x8xf32> to vector<8xf32>
    %159 = vector.shape_cast %158 : vector<8xf32> to vector<1x1x8xf32>
    %160 = vector.broadcast %159 : vector<1x1x8xf32> to vector<4x8x8xf32>
    %161 = arith.mulf %156, %160 : vector<4x8x8xf32>
    %162 = arith.addf %155, %161 : vector<4x8x8xf32>
    %c0_74 = arith.constant 0 : index
    %c1_75 = arith.constant 1 : index
    %163 = arith.index_cast %1 : i32 to index
    %c2_76 = arith.constant 2 : index
    %c0_77 = arith.constant 0 : index
    %164 = vector.load %arg2[%c0_74, %c1_75, %163, %c2_76, %c0_77] : memref<1x4x11x11x4xf32, #tpu.memory_space<vmem>>, vector<1x1x7x8x4xf32>
    %165 = vector.shape_cast %164 : vector<1x1x7x8x4xf32> to vector<7x8x4xf32>
    %166 = tpu.concatenate %165, %165 in 2 : vector<7x8x4xf32>, vector<7x8x4xf32> -> vector<7x8x8xf32>
    %167 = vector.extract_strided_slice %166 {offsets = [0, 0, 0], sizes = [4, 8, 8], strides = [1, 1, 1]} : vector<7x8x8xf32> to vector<4x8x8xf32>
    %c0_78 = arith.constant 0 : index
    %c5 = arith.constant 5 : index
    %c0_79 = arith.constant 0 : index
    %168 = vector.load %arg3[%c0_78, %c5, %c0_79] : memref<7x7x8xf32, #tpu.memory_space<vmem>>, vector<1x1x8xf32>
    %169 = vector.shape_cast %168 : vector<1x1x8xf32> to vector<8xf32>
    %170 = vector.shape_cast %169 : vector<8xf32> to vector<1x1x8xf32>
    %171 = vector.broadcast %170 : vector<1x1x8xf32> to vector<4x8x8xf32>
    %172 = arith.mulf %167, %171 : vector<4x8x8xf32>
    %173 = arith.addf %162, %172 : vector<4x8x8xf32>
    %174 = vector.extract_strided_slice %166 {offsets = [1, 0, 0], sizes = [4, 8, 8], strides = [1, 1, 1]} : vector<7x8x8xf32> to vector<4x8x8xf32>
    %c2_80 = arith.constant 2 : index
    %c5_81 = arith.constant 5 : index
    %c0_82 = arith.constant 0 : index
    %175 = vector.load %arg3[%c2_80, %c5_81, %c0_82] : memref<7x7x8xf32, #tpu.memory_space<vmem>>, vector<1x1x8xf32>
    %176 = vector.shape_cast %175 : vector<1x1x8xf32> to vector<8xf32>
    %177 = vector.shape_cast %176 : vector<8xf32> to vector<1x1x8xf32>
    %178 = vector.broadcast %177 : vector<1x1x8xf32> to vector<4x8x8xf32>
    %179 = arith.mulf %174, %178 : vector<4x8x8xf32>
    %180 = arith.addf %173, %179 : vector<4x8x8xf32>
    %181 = vector.extract_strided_slice %166 {offsets = [2, 0, 0], sizes = [4, 8, 8], strides = [1, 1, 1]} : vector<7x8x8xf32> to vector<4x8x8xf32>
    %c4_83 = arith.constant 4 : index
    %c5_84 = arith.constant 5 : index
    %c0_85 = arith.constant 0 : index
    %182 = vector.load %arg3[%c4_83, %c5_84, %c0_85] : memref<7x7x8xf32, #tpu.memory_space<vmem>>, vector<1x1x8xf32>
    %183 = vector.shape_cast %182 : vector<1x1x8xf32> to vector<8xf32>
    %184 = vector.shape_cast %183 : vector<8xf32> to vector<1x1x8xf32>
    %185 = vector.broadcast %184 : vector<1x1x8xf32> to vector<4x8x8xf32>
    %186 = arith.mulf %181, %185 : vector<4x8x8xf32>
    %187 = arith.addf %180, %186 : vector<4x8x8xf32>
    %188 = vector.extract_strided_slice %166 {offsets = [3, 0, 0], sizes = [4, 8, 8], strides = [1, 1, 1]} : vector<7x8x8xf32> to vector<4x8x8xf32>
    %c6_86 = arith.constant 6 : index
    %c5_87 = arith.constant 5 : index
    %c0_88 = arith.constant 0 : index
    %189 = vector.load %arg3[%c6_86, %c5_87, %c0_88] : memref<7x7x8xf32, #tpu.memory_space<vmem>>, vector<1x1x8xf32>
    %190 = vector.shape_cast %189 : vector<1x1x8xf32> to vector<8xf32>
    %191 = vector.shape_cast %190 : vector<8xf32> to vector<1x1x8xf32>
    %192 = vector.broadcast %191 : vector<1x1x8xf32> to vector<4x8x8xf32>
    %193 = arith.mulf %188, %192 : vector<4x8x8xf32>
    %194 = arith.addf %187, %193 : vector<4x8x8xf32>
    %c0_89 = arith.constant 0 : index
    %c0_90 = arith.constant 0 : index
    %195 = arith.index_cast %1 : i32 to index
    %c3_91 = arith.constant 3 : index
    %c0_92 = arith.constant 0 : index
    %196 = vector.load %arg2[%c0_89, %c0_90, %195, %c3_91, %c0_92] : memref<1x4x11x11x4xf32, #tpu.memory_space<vmem>>, vector<1x1x7x8x4xf32>
    %197 = vector.shape_cast %196 : vector<1x1x7x8x4xf32> to vector<7x8x4xf32>
    %198 = tpu.concatenate %197, %197 in 2 : vector<7x8x4xf32>, vector<7x8x4xf32> -> vector<7x8x8xf32>
    %199 = vector.extract_strided_slice %198 {offsets = [0, 0, 0], sizes = [4, 8, 8], strides = [1, 1, 1]} : vector<7x8x8xf32> to vector<4x8x8xf32>
    %c0_93 = arith.constant 0 : index
    %c6_94 = arith.constant 6 : index
    %c0_95 = arith.constant 0 : index
    %200 = vector.load %arg3[%c0_93, %c6_94, %c0_95] : memref<7x7x8xf32, #tpu.memory_space<vmem>>, vector<1x1x8xf32>
    %201 = vector.shape_cast %200 : vector<1x1x8xf32> to vector<8xf32>
    %202 = vector.shape_cast %201 : vector<8xf32> to vector<1x1x8xf32>
    %203 = vector.broadcast %202 : vector<1x1x8xf32> to vector<4x8x8xf32>
    %204 = arith.mulf %199, %203 : vector<4x8x8xf32>
    %205 = arith.addf %194, %204 : vector<4x8x8xf32>
    %206 = vector.extract_strided_slice %198 {offsets = [1, 0, 0], sizes = [4, 8, 8], strides = [1, 1, 1]} : vector<7x8x8xf32> to vector<4x8x8xf32>
    %c2_96 = arith.constant 2 : index
    %c6_97 = arith.constant 6 : index
    %c0_98 = arith.constant 0 : index
    %207 = vector.load %arg3[%c2_96, %c6_97, %c0_98] : memref<7x7x8xf32, #tpu.memory_space<vmem>>, vector<1x1x8xf32>
    %208 = vector.shape_cast %207 : vector<1x1x8xf32> to vector<8xf32>
    %209 = vector.shape_cast %208 : vector<8xf32> to vector<1x1x8xf32>
    %210 = vector.broadcast %209 : vector<1x1x8xf32> to vector<4x8x8xf32>
    %211 = arith.mulf %206, %210 : vector<4x8x8xf32>
    %212 = arith.addf %205, %211 : vector<4x8x8xf32>
    %213 = vector.extract_strided_slice %198 {offsets = [2, 0, 0], sizes = [4, 8, 8], strides = [1, 1, 1]} : vector<7x8x8xf32> to vector<4x8x8xf32>
    %c4_99 = arith.constant 4 : index
    %c6_100 = arith.constant 6 : index
    %c0_101 = arith.constant 0 : index
    %214 = vector.load %arg3[%c4_99, %c6_100, %c0_101] : memref<7x7x8xf32, #tpu.memory_space<vmem>>, vector<1x1x8xf32>
    %215 = vector.shape_cast %214 : vector<1x1x8xf32> to vector<8xf32>
    %216 = vector.shape_cast %215 : vector<8xf32> to vector<1x1x8xf32>
    %217 = vector.broadcast %216 : vector<1x1x8xf32> to vector<4x8x8xf32>
    %218 = arith.mulf %213, %217 : vector<4x8x8xf32>
    %219 = arith.addf %212, %218 : vector<4x8x8xf32>
    %220 = vector.extract_strided_slice %198 {offsets = [3, 0, 0], sizes = [4, 8, 8], strides = [1, 1, 1]} : vector<7x8x8xf32> to vector<4x8x8xf32>
    %c6_102 = arith.constant 6 : index
    %c6_103 = arith.constant 6 : index
    %c0_104 = arith.constant 0 : index
    %221 = vector.load %arg3[%c6_102, %c6_103, %c0_104] : memref<7x7x8xf32, #tpu.memory_space<vmem>>, vector<1x1x8xf32>
    %222 = vector.shape_cast %221 : vector<1x1x8xf32> to vector<8xf32>
    %223 = vector.shape_cast %222 : vector<8xf32> to vector<1x1x8xf32>
    %224 = vector.broadcast %223 : vector<1x1x8xf32> to vector<4x8x8xf32>
    %225 = arith.mulf %220, %224 : vector<4x8x8xf32>
    %226 = arith.addf %219, %225 : vector<4x8x8xf32>
    %c0_105 = arith.constant 0 : index
    %c2_106 = arith.constant 2 : index
    %227 = arith.index_cast %1 : i32 to index
    %c0_107 = arith.constant 0 : index
    %c0_108 = arith.constant 0 : index
    %228 = vector.load %arg2[%c0_105, %c2_106, %227, %c0_107, %c0_108] : memref<1x4x11x11x4xf32, #tpu.memory_space<vmem>>, vector<1x1x7x8x4xf32>
    %229 = vector.shape_cast %228 : vector<1x1x7x8x4xf32> to vector<7x8x4xf32>
    %230 = tpu.concatenate %229, %229 in 2 : vector<7x8x4xf32>, vector<7x8x4xf32> -> vector<7x8x8xf32>
    %231 = vector.extract_strided_slice %230 {offsets = [0, 0, 0], sizes = [4, 8, 8], strides = [1, 1, 1]} : vector<7x8x8xf32> to vector<4x8x8xf32>
    %c1_109 = arith.constant 1 : index
    %c0_110 = arith.constant 0 : index
    %c0_111 = arith.constant 0 : index
    %232 = vector.load %arg3[%c1_109, %c0_110, %c0_111] : memref<7x7x8xf32, #tpu.memory_space<vmem>>, vector<1x1x8xf32>
    %233 = vector.shape_cast %232 : vector<1x1x8xf32> to vector<8xf32>
    %234 = vector.shape_cast %233 : vector<8xf32> to vector<1x1x8xf32>
    %235 = vector.broadcast %234 : vector<1x1x8xf32> to vector<4x8x8xf32>
    %236 = arith.mulf %231, %235 : vector<4x8x8xf32>
    %237 = arith.addf %226, %236 : vector<4x8x8xf32>
    %238 = vector.extract_strided_slice %230 {offsets = [1, 0, 0], sizes = [4, 8, 8], strides = [1, 1, 1]} : vector<7x8x8xf32> to vector<4x8x8xf32>
    %c3_112 = arith.constant 3 : index
    %c0_113 = arith.constant 0 : index
    %c0_114 = arith.constant 0 : index
    %239 = vector.load %arg3[%c3_112, %c0_113, %c0_114] : memref<7x7x8xf32, #tpu.memory_space<vmem>>, vector<1x1x8xf32>
    %240 = vector.shape_cast %239 : vector<1x1x8xf32> to vector<8xf32>
    %241 = vector.shape_cast %240 : vector<8xf32> to vector<1x1x8xf32>
    %242 = vector.broadcast %241 : vector<1x1x8xf32> to vector<4x8x8xf32>
    %243 = arith.mulf %238, %242 : vector<4x8x8xf32>
    %244 = arith.addf %237, %243 : vector<4x8x8xf32>
    %245 = vector.extract_strided_slice %230 {offsets = [2, 0, 0], sizes = [4, 8, 8], strides = [1, 1, 1]} : vector<7x8x8xf32> to vector<4x8x8xf32>
    %c5_115 = arith.constant 5 : index
    %c0_116 = arith.constant 0 : index
    %c0_117 = arith.constant 0 : index
    %246 = vector.load %arg3[%c5_115, %c0_116, %c0_117] : memref<7x7x8xf32, #tpu.memory_space<vmem>>, vector<1x1x8xf32>
    %247 = vector.shape_cast %246 : vector<1x1x8xf32> to vector<8xf32>
    %248 = vector.shape_cast %247 : vector<8xf32> to vector<1x1x8xf32>
    %249 = vector.broadcast %248 : vector<1x1x8xf32> to vector<4x8x8xf32>
    %250 = arith.mulf %245, %249 : vector<4x8x8xf32>
    %251 = arith.addf %244, %250 : vector<4x8x8xf32>
    %c0_118 = arith.constant 0 : index
    %c3_119 = arith.constant 3 : index
    %252 = arith.index_cast %1 : i32 to index
    %c0_120 = arith.constant 0 : index
    %c0_121 = arith.constant 0 : index
    %253 = vector.load %arg2[%c0_118, %c3_119, %252, %c0_120, %c0_121] : memref<1x4x11x11x4xf32, #tpu.memory_space<vmem>>, vector<1x1x7x8x4xf32>
    %254 = vector.shape_cast %253 : vector<1x1x7x8x4xf32> to vector<7x8x4xf32>
    %255 = tpu.concatenate %254, %254 in 2 : vector<7x8x4xf32>, vector<7x8x4xf32> -> vector<7x8x8xf32>
    %256 = vector.extract_strided_slice %255 {offsets = [0, 0, 0], sizes = [4, 8, 8], strides = [1, 1, 1]} : vector<7x8x8xf32> to vector<4x8x8xf32>
    %c1_122 = arith.constant 1 : index
    %c1_123 = arith.constant 1 : index
    %c0_124 = arith.constant 0 : index
    %257 = vector.load %arg3[%c1_122, %c1_123, %c0_124] : memref<7x7x8xf32, #tpu.memory_space<vmem>>, vector<1x1x8xf32>
    %258 = vector.shape_cast %257 : vector<1x1x8xf32> to vector<8xf32>
    %259 = vector.shape_cast %258 : vector<8xf32> to vector<1x1x8xf32>
    %260 = vector.broadcast %259 : vector<1x1x8xf32> to vector<4x8x8xf32>
    %261 = arith.mulf %256, %260 : vector<4x8x8xf32>
    %262 = arith.addf %251, %261 : vector<4x8x8xf32>
    %263 = vector.extract_strided_slice %255 {offsets = [1, 0, 0], sizes = [4, 8, 8], strides = [1, 1, 1]} : vector<7x8x8xf32> to vector<4x8x8xf32>
    %c3_125 = arith.constant 3 : index
    %c1_126 = arith.constant 1 : index
    %c0_127 = arith.constant 0 : index
    %264 = vector.load %arg3[%c3_125, %c1_126, %c0_127] : memref<7x7x8xf32, #tpu.memory_space<vmem>>, vector<1x1x8xf32>
    %265 = vector.shape_cast %264 : vector<1x1x8xf32> to vector<8xf32>
    %266 = vector.shape_cast %265 : vector<8xf32> to vector<1x1x8xf32>
    %267 = vector.broadcast %266 : vector<1x1x8xf32> to vector<4x8x8xf32>
    %268 = arith.mulf %263, %267 : vector<4x8x8xf32>
    %269 = arith.addf %262, %268 : vector<4x8x8xf32>
    %270 = vector.extract_strided_slice %255 {offsets = [2, 0, 0], sizes = [4, 8, 8], strides = [1, 1, 1]} : vector<7x8x8xf32> to vector<4x8x8xf32>
    %c5_128 = arith.constant 5 : index
    %c1_129 = arith.constant 1 : index
    %c0_130 = arith.constant 0 : index
    %271 = vector.load %arg3[%c5_128, %c1_129, %c0_130] : memref<7x7x8xf32, #tpu.memory_space<vmem>>, vector<1x1x8xf32>
    %272 = vector.shape_cast %271 : vector<1x1x8xf32> to vector<8xf32>
    %273 = vector.shape_cast %272 : vector<8xf32> to vector<1x1x8xf32>
    %274 = vector.broadcast %273 : vector<1x1x8xf32> to vector<4x8x8xf32>
    %275 = arith.mulf %270, %274 : vector<4x8x8xf32>
    %276 = arith.addf %269, %275 : vector<4x8x8xf32>
    %c0_131 = arith.constant 0 : index
    %c2_132 = arith.constant 2 : index
    %277 = arith.index_cast %1 : i32 to index
    %c1_133 = arith.constant 1 : index
    %c0_134 = arith.constant 0 : index
    %278 = vector.load %arg2[%c0_131, %c2_132, %277, %c1_133, %c0_134] : memref<1x4x11x11x4xf32, #tpu.memory_space<vmem>>, vector<1x1x7x8x4xf32>
    %279 = vector.shape_cast %278 : vector<1x1x7x8x4xf32> to vector<7x8x4xf32>
    %280 = tpu.concatenate %279, %279 in 2 : vector<7x8x4xf32>, vector<7x8x4xf32> -> vector<7x8x8xf32>
    %281 = vector.extract_strided_slice %280 {offsets = [0, 0, 0], sizes = [4, 8, 8], strides = [1, 1, 1]} : vector<7x8x8xf32> to vector<4x8x8xf32>
    %c1_135 = arith.constant 1 : index
    %c2_136 = arith.constant 2 : index
    %c0_137 = arith.constant 0 : index
    %282 = vector.load %arg3[%c1_135, %c2_136, %c0_137] : memref<7x7x8xf32, #tpu.memory_space<vmem>>, vector<1x1x8xf32>
    %283 = vector.shape_cast %282 : vector<1x1x8xf32> to vector<8xf32>
    %284 = vector.shape_cast %283 : vector<8xf32> to vector<1x1x8xf32>
    %285 = vector.broadcast %284 : vector<1x1x8xf32> to vector<4x8x8xf32>
    %286 = arith.mulf %281, %285 : vector<4x8x8xf32>
    %287 = arith.addf %276, %286 : vector<4x8x8xf32>
    %288 = vector.extract_strided_slice %280 {offsets = [1, 0, 0], sizes = [4, 8, 8], strides = [1, 1, 1]} : vector<7x8x8xf32> to vector<4x8x8xf32>
    %c3_138 = arith.constant 3 : index
    %c2_139 = arith.constant 2 : index
    %c0_140 = arith.constant 0 : index
    %289 = vector.load %arg3[%c3_138, %c2_139, %c0_140] : memref<7x7x8xf32, #tpu.memory_space<vmem>>, vector<1x1x8xf32>
    %290 = vector.shape_cast %289 : vector<1x1x8xf32> to vector<8xf32>
    %291 = vector.shape_cast %290 : vector<8xf32> to vector<1x1x8xf32>
    %292 = vector.broadcast %291 : vector<1x1x8xf32> to vector<4x8x8xf32>
    %293 = arith.mulf %288, %292 : vector<4x8x8xf32>
    %294 = arith.addf %287, %293 : vector<4x8x8xf32>
    %295 = vector.extract_strided_slice %280 {offsets = [2, 0, 0], sizes = [4, 8, 8], strides = [1, 1, 1]} : vector<7x8x8xf32> to vector<4x8x8xf32>
    %c5_141 = arith.constant 5 : index
    %c2_142 = arith.constant 2 : index
    %c0_143 = arith.constant 0 : index
    %296 = vector.load %arg3[%c5_141, %c2_142, %c0_143] : memref<7x7x8xf32, #tpu.memory_space<vmem>>, vector<1x1x8xf32>
    %297 = vector.shape_cast %296 : vector<1x1x8xf32> to vector<8xf32>
    %298 = vector.shape_cast %297 : vector<8xf32> to vector<1x1x8xf32>
    %299 = vector.broadcast %298 : vector<1x1x8xf32> to vector<4x8x8xf32>
    %300 = arith.mulf %295, %299 : vector<4x8x8xf32>
    %301 = arith.addf %294, %300 : vector<4x8x8xf32>
    %c0_144 = arith.constant 0 : index
    %c3_145 = arith.constant 3 : index
    %302 = arith.index_cast %1 : i32 to index
    %c1_146 = arith.constant 1 : index
    %c0_147 = arith.constant 0 : index
    %303 = vector.load %arg2[%c0_144, %c3_145, %302, %c1_146, %c0_147] : memref<1x4x11x11x4xf32, #tpu.memory_space<vmem>>, vector<1x1x7x8x4xf32>
    %304 = vector.shape_cast %303 : vector<1x1x7x8x4xf32> to vector<7x8x4xf32>
    %305 = tpu.concatenate %304, %304 in 2 : vector<7x8x4xf32>, vector<7x8x4xf32> -> vector<7x8x8xf32>
    %306 = vector.extract_strided_slice %305 {offsets = [0, 0, 0], sizes = [4, 8, 8], strides = [1, 1, 1]} : vector<7x8x8xf32> to vector<4x8x8xf32>
    %c1_148 = arith.constant 1 : index
    %c3_149 = arith.constant 3 : index
    %c0_150 = arith.constant 0 : index
    %307 = vector.load %arg3[%c1_148, %c3_149, %c0_150] : memref<7x7x8xf32, #tpu.memory_space<vmem>>, vector<1x1x8xf32>
    %308 = vector.shape_cast %307 : vector<1x1x8xf32> to vector<8xf32>
    %309 = vector.shape_cast %308 : vector<8xf32> to vector<1x1x8xf32>
    %310 = vector.broadcast %309 : vector<1x1x8xf32> to vector<4x8x8xf32>
    %311 = arith.mulf %306, %310 : vector<4x8x8xf32>
    %312 = arith.addf %301, %311 : vector<4x8x8xf32>
    %313 = vector.extract_strided_slice %305 {offsets = [1, 0, 0], sizes = [4, 8, 8], strides = [1, 1, 1]} : vector<7x8x8xf32> to vector<4x8x8xf32>
    %c3_151 = arith.constant 3 : index
    %c3_152 = arith.constant 3 : index
    %c0_153 = arith.constant 0 : index
    %314 = vector.load %arg3[%c3_151, %c3_152, %c0_153] : memref<7x7x8xf32, #tpu.memory_space<vmem>>, vector<1x1x8xf32>
    %315 = vector.shape_cast %314 : vector<1x1x8xf32> to vector<8xf32>
    %316 = vector.shape_cast %315 : vector<8xf32> to vector<1x1x8xf32>
    %317 = vector.broadcast %316 : vector<1x1x8xf32> to vector<4x8x8xf32>
    %318 = arith.mulf %313, %317 : vector<4x8x8xf32>
    %319 = arith.addf %312, %318 : vector<4x8x8xf32>
    %320 = vector.extract_strided_slice %305 {offsets = [2, 0, 0], sizes = [4, 8, 8], strides = [1, 1, 1]} : vector<7x8x8xf32> to vector<4x8x8xf32>
    %c5_154 = arith.constant 5 : index
    %c3_155 = arith.constant 3 : index
    %c0_156 = arith.constant 0 : index
    %321 = vector.load %arg3[%c5_154, %c3_155, %c0_156] : memref<7x7x8xf32, #tpu.memory_space<vmem>>, vector<1x1x8xf32>
    %322 = vector.shape_cast %321 : vector<1x1x8xf32> to vector<8xf32>
    %323 = vector.shape_cast %322 : vector<8xf32> to vector<1x1x8xf32>
    %324 = vector.broadcast %323 : vector<1x1x8xf32> to vector<4x8x8xf32>
    %325 = arith.mulf %320, %324 : vector<4x8x8xf32>
    %326 = arith.addf %319, %325 : vector<4x8x8xf32>
    %c0_157 = arith.constant 0 : index
    %c2_158 = arith.constant 2 : index
    %327 = arith.index_cast %1 : i32 to index
    %c2_159 = arith.constant 2 : index
    %c0_160 = arith.constant 0 : index
    %328 = vector.load %arg2[%c0_157, %c2_158, %327, %c2_159, %c0_160] : memref<1x4x11x11x4xf32, #tpu.memory_space<vmem>>, vector<1x1x7x8x4xf32>
    %329 = vector.shape_cast %328 : vector<1x1x7x8x4xf32> to vector<7x8x4xf32>
    %330 = tpu.concatenate %329, %329 in 2 : vector<7x8x4xf32>, vector<7x8x4xf32> -> vector<7x8x8xf32>
    %331 = vector.extract_strided_slice %330 {offsets = [0, 0, 0], sizes = [4, 8, 8], strides = [1, 1, 1]} : vector<7x8x8xf32> to vector<4x8x8xf32>
    %c1_161 = arith.constant 1 : index
    %c4_162 = arith.constant 4 : index
    %c0_163 = arith.constant 0 : index
    %332 = vector.load %arg3[%c1_161, %c4_162, %c0_163] : memref<7x7x8xf32, #tpu.memory_space<vmem>>, vector<1x1x8xf32>
    %333 = vector.shape_cast %332 : vector<1x1x8xf32> to vector<8xf32>
    %334 = vector.shape_cast %333 : vector<8xf32> to vector<1x1x8xf32>
    %335 = vector.broadcast %334 : vector<1x1x8xf32> to vector<4x8x8xf32>
    %336 = arith.mulf %331, %335 : vector<4x8x8xf32>
    %337 = arith.addf %326, %336 : vector<4x8x8xf32>
    %338 = vector.extract_strided_slice %330 {offsets = [1, 0, 0], sizes = [4, 8, 8], strides = [1, 1, 1]} : vector<7x8x8xf32> to vector<4x8x8xf32>
    %c3_164 = arith.constant 3 : index
    %c4_165 = arith.constant 4 : index
    %c0_166 = arith.constant 0 : index
    %339 = vector.load %arg3[%c3_164, %c4_165, %c0_166] : memref<7x7x8xf32, #tpu.memory_space<vmem>>, vector<1x1x8xf32>
    %340 = vector.shape_cast %339 : vector<1x1x8xf32> to vector<8xf32>
    %341 = vector.shape_cast %340 : vector<8xf32> to vector<1x1x8xf32>
    %342 = vector.broadcast %341 : vector<1x1x8xf32> to vector<4x8x8xf32>
    %343 = arith.mulf %338, %342 : vector<4x8x8xf32>
    %344 = arith.addf %337, %343 : vector<4x8x8xf32>
    %345 = vector.extract_strided_slice %330 {offsets = [2, 0, 0], sizes = [4, 8, 8], strides = [1, 1, 1]} : vector<7x8x8xf32> to vector<4x8x8xf32>
    %c5_167 = arith.constant 5 : index
    %c4_168 = arith.constant 4 : index
    %c0_169 = arith.constant 0 : index
    %346 = vector.load %arg3[%c5_167, %c4_168, %c0_169] : memref<7x7x8xf32, #tpu.memory_space<vmem>>, vector<1x1x8xf32>
    %347 = vector.shape_cast %346 : vector<1x1x8xf32> to vector<8xf32>
    %348 = vector.shape_cast %347 : vector<8xf32> to vector<1x1x8xf32>
    %349 = vector.broadcast %348 : vector<1x1x8xf32> to vector<4x8x8xf32>
    %350 = arith.mulf %345, %349 : vector<4x8x8xf32>
    %351 = arith.addf %344, %350 : vector<4x8x8xf32>
    %c0_170 = arith.constant 0 : index
    %c3_171 = arith.constant 3 : index
    %352 = arith.index_cast %1 : i32 to index
    %c2_172 = arith.constant 2 : index
    %c0_173 = arith.constant 0 : index
    %353 = vector.load %arg2[%c0_170, %c3_171, %352, %c2_172, %c0_173] : memref<1x4x11x11x4xf32, #tpu.memory_space<vmem>>, vector<1x1x7x8x4xf32>
    %354 = vector.shape_cast %353 : vector<1x1x7x8x4xf32> to vector<7x8x4xf32>
    %355 = tpu.concatenate %354, %354 in 2 : vector<7x8x4xf32>, vector<7x8x4xf32> -> vector<7x8x8xf32>
    %356 = vector.extract_strided_slice %355 {offsets = [0, 0, 0], sizes = [4, 8, 8], strides = [1, 1, 1]} : vector<7x8x8xf32> to vector<4x8x8xf32>
    %c1_174 = arith.constant 1 : index
    %c5_175 = arith.constant 5 : index
    %c0_176 = arith.constant 0 : index
    %357 = vector.load %arg3[%c1_174, %c5_175, %c0_176] : memref<7x7x8xf32, #tpu.memory_space<vmem>>, vector<1x1x8xf32>
    %358 = vector.shape_cast %357 : vector<1x1x8xf32> to vector<8xf32>
    %359 = vector.shape_cast %358 : vector<8xf32> to vector<1x1x8xf32>
    %360 = vector.broadcast %359 : vector<1x1x8xf32> to vector<4x8x8xf32>
    %361 = arith.mulf %356, %360 : vector<4x8x8xf32>
    %362 = arith.addf %351, %361 : vector<4x8x8xf32>
    %363 = vector.extract_strided_slice %355 {offsets = [1, 0, 0], sizes = [4, 8, 8], strides = [1, 1, 1]} : vector<7x8x8xf32> to vector<4x8x8xf32>
    %c3_177 = arith.constant 3 : index
    %c5_178 = arith.constant 5 : index
    %c0_179 = arith.constant 0 : index
    %364 = vector.load %arg3[%c3_177, %c5_178, %c0_179] : memref<7x7x8xf32, #tpu.memory_space<vmem>>, vector<1x1x8xf32>
    %365 = vector.shape_cast %364 : vector<1x1x8xf32> to vector<8xf32>
    %366 = vector.shape_cast %365 : vector<8xf32> to vector<1x1x8xf32>
    %367 = vector.broadcast %366 : vector<1x1x8xf32> to vector<4x8x8xf32>
    %368 = arith.mulf %363, %367 : vector<4x8x8xf32>
    %369 = arith.addf %362, %368 : vector<4x8x8xf32>
    %370 = vector.extract_strided_slice %355 {offsets = [2, 0, 0], sizes = [4, 8, 8], strides = [1, 1, 1]} : vector<7x8x8xf32> to vector<4x8x8xf32>
    %c5_180 = arith.constant 5 : index
    %c5_181 = arith.constant 5 : index
    %c0_182 = arith.constant 0 : index
    %371 = vector.load %arg3[%c5_180, %c5_181, %c0_182] : memref<7x7x8xf32, #tpu.memory_space<vmem>>, vector<1x1x8xf32>
    %372 = vector.shape_cast %371 : vector<1x1x8xf32> to vector<8xf32>
    %373 = vector.shape_cast %372 : vector<8xf32> to vector<1x1x8xf32>
    %374 = vector.broadcast %373 : vector<1x1x8xf32> to vector<4x8x8xf32>
    %375 = arith.mulf %370, %374 : vector<4x8x8xf32>
    %376 = arith.addf %369, %375 : vector<4x8x8xf32>
    %c0_183 = arith.constant 0 : index
    %c2_184 = arith.constant 2 : index
    %377 = arith.index_cast %1 : i32 to index
    %c3_185 = arith.constant 3 : index
    %c0_186 = arith.constant 0 : index
    %378 = vector.load %arg2[%c0_183, %c2_184, %377, %c3_185, %c0_186] : memref<1x4x11x11x4xf32, #tpu.memory_space<vmem>>, vector<1x1x7x8x4xf32>
    %379 = vector.shape_cast %378 : vector<1x1x7x8x4xf32> to vector<7x8x4xf32>
    %380 = tpu.concatenate %379, %379 in 2 : vector<7x8x4xf32>, vector<7x8x4xf32> -> vector<7x8x8xf32>
    %381 = vector.extract_strided_slice %380 {offsets = [0, 0, 0], sizes = [4, 8, 8], strides = [1, 1, 1]} : vector<7x8x8xf32> to vector<4x8x8xf32>
    %c1_187 = arith.constant 1 : index
    %c6_188 = arith.constant 6 : index
    %c0_189 = arith.constant 0 : index
    %382 = vector.load %arg3[%c1_187, %c6_188, %c0_189] : memref<7x7x8xf32, #tpu.memory_space<vmem>>, vector<1x1x8xf32>
    %383 = vector.shape_cast %382 : vector<1x1x8xf32> to vector<8xf32>
    %384 = vector.shape_cast %383 : vector<8xf32> to vector<1x1x8xf32>
    %385 = vector.broadcast %384 : vector<1x1x8xf32> to vector<4x8x8xf32>
    %386 = arith.mulf %381, %385 : vector<4x8x8xf32>
    %387 = arith.addf %376, %386 : vector<4x8x8xf32>
    %388 = vector.extract_strided_slice %380 {offsets = [1, 0, 0], sizes = [4, 8, 8], strides = [1, 1, 1]} : vector<7x8x8xf32> to vector<4x8x8xf32>
    %c3_190 = arith.constant 3 : index
    %c6_191 = arith.constant 6 : index
    %c0_192 = arith.constant 0 : index
    %389 = vector.load %arg3[%c3_190, %c6_191, %c0_192] : memref<7x7x8xf32, #tpu.memory_space<vmem>>, vector<1x1x8xf32>
    %390 = vector.shape_cast %389 : vector<1x1x8xf32> to vector<8xf32>
    %391 = vector.shape_cast %390 : vector<8xf32> to vector<1x1x8xf32>
    %392 = vector.broadcast %391 : vector<1x1x8xf32> to vector<4x8x8xf32>
    %393 = arith.mulf %388, %392 : vector<4x8x8xf32>
    %394 = arith.addf %387, %393 : vector<4x8x8xf32>
    %395 = vector.extract_strided_slice %380 {offsets = [2, 0, 0], sizes = [4, 8, 8], strides = [1, 1, 1]} : vector<7x8x8xf32> to vector<4x8x8xf32>
    %c5_193 = arith.constant 5 : index
    %c6_194 = arith.constant 6 : index
    %c0_195 = arith.constant 0 : index
    %396 = vector.load %arg3[%c5_193, %c6_194, %c0_195] : memref<7x7x8xf32, #tpu.memory_space<vmem>>, vector<1x1x8xf32>
    %397 = vector.shape_cast %396 : vector<1x1x8xf32> to vector<8xf32>
    %398 = vector.shape_cast %397 : vector<8xf32> to vector<1x1x8xf32>
    %399 = vector.broadcast %398 : vector<1x1x8xf32> to vector<4x8x8xf32>
    %400 = arith.mulf %395, %399 : vector<4x8x8xf32>
    %401 = arith.addf %394, %400 : vector<4x8x8xf32>
    %402 = vector.shape_cast %401 : vector<4x8x8xf32> to vector<32x8xf32>
    %c0_196 = arith.constant 0 : index
    %c0_197 = arith.constant 0 : index
    %403 = vector.load %arg4[%c0_196, %c0_197] : memref<1x8xf32, #tpu.memory_space<vmem>>, vector<1x8xf32>
    %404 = vector.broadcast %403 : vector<1x8xf32> to vector<32x8xf32>
    %405 = arith.addf %402, %404 : vector<32x8xf32>
    %c0_198 = arith.constant 0 : index
    %c0_199 = arith.constant 0 : index
    %406 = vector.load %arg11[%c0_198, %c0_199] : memref<32x8xf32, #tpu.memory_space<vmem>>, vector<32x8xf32>
    tpu.vector_store %arg11[%c0_198, %c0_199], %405 {strides = array<i32>} : memref<32x8xf32, #tpu.memory_space<vmem>>, vector<32x8xf32>,
    %c0_200 = arith.constant 0 : index
    %c0_201 = arith.constant 0 : index
    %407 = vector.load %arg11[%c0_200, %c0_201] : memref<32x8xf32, #tpu.memory_space<vmem>>, vector<32x8xf32>
    %c0_202 = arith.constant 0 : index
    %c0_203 = arith.constant 0 : index
    %408 = vector.load %arg5[%c0_202, %c0_203] : memref<8x16xf32, #tpu.memory_space<vmem>>, vector<8x16xf32>
    %cst_204 = arith.constant dense<0.000000e+00> : vector<32x16xf32>
    %409 = tpu.matmul %407, %408, %cst_204 {dimension_numbers = #tpu.dot_dimension_numbers<[1], [0], [0], [1], [0, 0, 1, 1], [], []>} : vector<32x8xf32>, vector<8x16xf32>, vector<32x16xf32> -> vector<32x16xf32>
    %c0_205 = arith.constant 0 : index
    %c0_206 = arith.constant 0 : index
    %410 = vector.load %arg6[%c0_205, %c0_206] : memref<1x16xf32, #tpu.memory_space<vmem>>, vector<1x16xf32>
    %411 = vector.broadcast %410 : vector<1x16xf32> to vector<32x16xf32>
    %412 = arith.addf %409, %411 : vector<32x16xf32>
    %cst_207 = arith.constant 5.000000e-01 : f32
    %413 = vector.broadcast %cst_207 : f32 to vector<32x16xf32>
    %414 = arith.mulf %413, %412 : vector<32x16xf32>
    %cst_208 = arith.constant 0.707106769 : f32
    %415 = vector.broadcast %cst_208 : f32 to vector<32x16xf32>
    %416 = arith.mulf %412, %415 : vector<32x16xf32>
    %417 = math.absf %416 : vector<32x16xf32>
    %cst_209 = arith.constant 0.327591091 : f32
    %418 = vector.broadcast %cst_209 : f32 to vector<32x16xf32>
    %419 = arith.mulf %418, %417 : vector<32x16xf32>
    %cst_210 = arith.constant 1.000000e+00 : f32
    %420 = vector.broadcast %cst_210 : f32 to vector<32x16xf32>
    %421 = arith.addf %420, %419 : vector<32x16xf32>
    %cst_211 = arith.constant 1.000000e+00 : f32
    %422 = vector.broadcast %cst_211 : f32 to vector<32x16xf32>
    %423 = arith.divf %422, %421 : vector<32x16xf32>
    %cst_212 = arith.constant 1.06140542 : f32
    %424 = vector.broadcast %cst_212 : f32 to vector<32x16xf32>
    %425 = arith.mulf %424, %423 : vector<32x16xf32>
    %cst_213 = arith.constant -1.45315206 : f32
    %426 = vector.broadcast %cst_213 : f32 to vector<32x16xf32>
    %427 = arith.addf %425, %426 : vector<32x16xf32>
    %428 = arith.mulf %427, %423 : vector<32x16xf32>
    %cst_214 = arith.constant 1.42141378 : f32
    %429 = vector.broadcast %cst_214 : f32 to vector<32x16xf32>
    %430 = arith.addf %428, %429 : vector<32x16xf32>
    %431 = arith.mulf %430, %423 : vector<32x16xf32>
    %cst_215 = arith.constant -0.284496725 : f32
    %432 = vector.broadcast %cst_215 : f32 to vector<32x16xf32>
    %433 = arith.addf %431, %432 : vector<32x16xf32>
    %434 = arith.mulf %433, %423 : vector<32x16xf32>
    %cst_216 = arith.constant 0.254829586 : f32
    %435 = vector.broadcast %cst_216 : f32 to vector<32x16xf32>
    %436 = arith.addf %434, %435 : vector<32x16xf32>
    %437 = arith.mulf %436, %423 : vector<32x16xf32>
    %cst_217 = arith.constant 0.000000e+00 : f32
    %438 = vector.broadcast %cst_217 : f32 to vector<32x16xf32>
    %439 = arith.subf %438, %417 : vector<32x16xf32>
    %440 = arith.mulf %439, %417 : vector<32x16xf32>
    %441 = math.exp %440 : vector<32x16xf32>
    %442 = arith.mulf %437, %441 : vector<32x16xf32>
    %cst_218 = arith.constant 1.000000e+00 : f32
    %443 = vector.broadcast %cst_218 : f32 to vector<32x16xf32>
    %444 = arith.subf %443, %442 : vector<32x16xf32>
    %cst_219 = arith.constant 0.000000e+00 : f32
    %445 = vector.broadcast %cst_219 : f32 to vector<32x16xf32>
    %446 = arith.cmpf oge, %416, %445 : vector<32x16xf32>
    %cst_220 = arith.constant 0.000000e+00 : f32
    %447 = vector.broadcast %cst_220 : f32 to vector<32x16xf32>
    %448 = arith.subf %447, %444 : vector<32x16xf32>
    %449 = arith.select %446, %444, %448 : vector<32x16xi1>, vector<32x16xf32>
    %cst_221 = arith.constant 1.000000e+00 : f32
    %450 = vector.broadcast %cst_221 : f32 to vector<32x16xf32>
    %451 = arith.addf %450, %449 : vector<32x16xf32>
    %452 = arith.mulf %414, %451 : vector<32x16xf32>
    %c0_222 = arith.constant 0 : index
    %c0_223 = arith.constant 0 : index
    %453 = vector.load %arg7[%c0_222, %c0_223] : memref<16x8xf32, #tpu.memory_space<vmem>>, vector<16x8xf32>
    %cst_224 = arith.constant dense<0.000000e+00> : vector<32x8xf32>
    %454 = tpu.matmul %452, %453, %cst_224 {dimension_numbers = #tpu.dot_dimension_numbers<[1], [0], [0], [1], [0, 0, 1, 1], [], []>} : vector<32x16xf32>, vector<16x8xf32>, vector<32x8xf32> -> vector<32x8xf32>
    %c0_225 = arith.constant 0 : index
    %c0_226 = arith.constant 0 : index
    %455 = vector.load %arg8[%c0_225, %c0_226] : memref<1x8xf32, #tpu.memory_space<vmem>>, vector<1x8xf32>
    %456 = vector.broadcast %455 : vector<1x8xf32> to vector<32x8xf32>
    %457 = arith.addf %454, %456 : vector<32x8xf32>
    %c0_227 = arith.constant 0 : index
    %c0_228 = arith.constant 0 : index
    %458 = vector.load %arg9[%c0_227, %c0_228] : memref<8x8xf32, #tpu.memory_space<vmem>>, vector<8x8xf32>
    %cst_229 = arith.constant dense<0.000000e+00> : vector<32x8xf32>
    %459 = tpu.matmul %407, %458, %cst_229 {dimension_numbers = #tpu.dot_dimension_numbers<[1], [0], [0], [1], [0, 0, 1, 1], [], []>} : vector<32x8xf32>, vector<8x8xf32>, vector<32x8xf32> -> vector<32x8xf32>
    %460 = arith.addf %459, %457 : vector<32x8xf32>
    %c0_230 = arith.constant 0 : index
    %c0_231 = arith.constant 0 : index
    %c0_232 = arith.constant 0 : index
    %461 = vector.load %arg10[%c0_230, %c0_231, %c0_232] : memref<1x32x8xf32, #tpu.memory_space<vmem>>, vector<1x32x8xf32>
    %462 = vector.shape_cast %461 : vector<1x32x8xf32> to vector<32x8xf32>
    %463 = vector.shape_cast %460 : vector<32x8xf32> to vector<1x32x8xf32>
    tpu.vector_store %arg10[%c0_230, %c0_231, %c0_232], %463 {strides = array<i32>} : memref<1x32x8xf32, #tpu.memory_space<vmem>>, vector<1x32x8xf32>,
    return
  }
  func.func @transform_0(%arg0: i32, %arg1: i32) -> (i32, i32, i32, i32, i32) {
    %c0_i32 = arith.constant 0 : i32
    %c0_i32_0 = arith.constant 0 : i32
    %c0_i32_1 = arith.constant 0 : i32
    %c0_i32_2 = arith.constant 0 : i32
    %c0_i32_3 = arith.constant 0 : i32
    return %arg0, %c0_i32, %c0_i32_0, %c0_i32_1, %c0_i32_2 : i32, i32, i32, i32, i32
  }
  func.func @transform_1(%arg0: i32, %arg1: i32) -> (i32, i32, i32) {
    %c0_i32 = arith.constant 0 : i32
    %c0_i32_0 = arith.constant 0 : i32
    %c0_i32_1 = arith.constant 0 : i32
    %c0_i32_2 = arith.constant 0 : i32
    return %c0_i32, %c0_i32_0, %c0_i32_1 : i32, i32, i32
  }
  func.func @transform_2(%arg0: i32, %arg1: i32) -> (i32, i32) {
    %c0_i32 = arith.constant 0 : i32
    %c0_i32_0 = arith.constant 0 : i32
    %c0_i32_1 = arith.constant 0 : i32
    return %c0_i32, %c0_i32_0 : i32, i32
  }
  func.func @transform_3(%arg0: i32, %arg1: i32) -> (i32, i32) {
    %c0_i32 = arith.constant 0 : i32
    %c0_i32_0 = arith.constant 0 : i32
    %c0_i32_1 = arith.constant 0 : i32
    return %c0_i32, %c0_i32_0 : i32, i32
  }
  func.func @transform_4(%arg0: i32, %arg1: i32) -> (i32, i32) {
    %c0_i32 = arith.constant 0 : i32
    %c0_i32_0 = arith.constant 0 : i32
    %c0_i32_1 = arith.constant 0 : i32
    return %c0_i32, %c0_i32_0 : i32, i32
  }
  func.func @transform_5(%arg0: i32, %arg1: i32) -> (i32, i32) {
    %c0_i32 = arith.constant 0 : i32
    %c0_i32_0 = arith.constant 0 : i32
    %c0_i32_1 = arith.constant 0 : i32
    return %c0_i32, %c0_i32_0 : i32, i32
  }
  func.func @transform_6(%arg0: i32, %arg1: i32) -> (i32, i32) {
    %c0_i32 = arith.constant 0 : i32
    %c0_i32_0 = arith.constant 0 : i32
    %c0_i32_1 = arith.constant 0 : i32
    return %c0_i32, %c0_i32_0 : i32, i32
  }
  func.func @transform_7(%arg0: i32, %arg1: i32) -> (i32, i32) {
    %c0_i32 = arith.constant 0 : i32
    %c0_i32_0 = arith.constant 0 : i32
    %c0_i32_1 = arith.constant 0 : i32
    return %c0_i32, %c0_i32_0 : i32, i32
  }
  func.func @transform_8(%arg0: i32, %arg1: i32) -> (i32, i32, i32) {
    %c0_i32 = arith.constant 0 : i32
    %c0_i32_0 = arith.constant 0 : i32
    return %arg0, %arg1, %c0_i32 : i32, i32, i32
  }
}

</mosaic_0001>

<llo_original>
// kernel: tpu_custom_call.1
$region0: #{tpu_custom_call.1}
  #allocation0 [shape = 'u32[]', space=smem, size = 0x4, offset = 0x4, fixed_abs, tag = 'smem constant byte address 0x4 - core index']
  #allocation1 [shape = 'u32[144,128]{1,0:T(1,128)}', space=vmem, size = 0x12000, scoped, tag = 'internal scratch']
  #allocation2 [shape = 'f32[32,8]{1,0:T(8,128)}', space=vmem, size = 0x4000, scoped, tag = 'scratch operand']
  %s0 = inlined_call_operand.vmem [shape: f32[2,4,11,11,4], index: 0, kind: input, shape index: {}]
  %s1 = inlined_call_operand.vmem [shape: f32[7,7,8], index: 1, kind: input, shape index: {}]
  %s2 = inlined_call_operand.vmem [shape: f32[1,8], index: 2, kind: input, shape index: {}]
  %s3 = inlined_call_operand.vmem [shape: f32[8,16], index: 3, kind: input, shape index: {}]
  %s4 = inlined_call_operand.vmem [shape: f32[1,16], index: 4, kind: input, shape index: {}]
  %s5 = inlined_call_operand.vmem [shape: f32[16,8], index: 5, kind: input, shape index: {}]
  %s6 = inlined_call_operand.vmem [shape: f32[1,8], index: 6, kind: input, shape index: {}]
  %s7 = inlined_call_operand.vmem [shape: f32[8,8], index: 7, kind: input, shape index: {}]
  %s8 = inlined_call_operand.vmem [shape: f32[2,64,8], index: 8, kind: output, shape index: {}]
  %s9 = sld [smem:[#allocation0]]
  $region65: #{tpu_custom_call.1} parent=0
    _
  %s11 = ssub.s32 1, %s9
  %s12 = scalar_select 0, %s11, %s9
  loop: start=0, step=1, limit=6
  $region2: #{tpu_custom_call.1} parent=0 // loop_pre_header
    _
  $region3: #{tpu_custom_call.1} parent=0 // loop_header
    %s14 = sphi 0, %s18
    %p15 = scmp.ge.s32.totalorder %s14, 6
    %s21 = sphi 0, %s33
    %s22 = sphi 0, %s29
    %s23 = sphi 0, %s21
    %s24 = sphi 0, %s22
    %s25 = sphi 0, %s23
    %s26 = sphi 0, %s24
    %s36 = sphi 0, %s38
    %s39 = sphi 0, %s36
    %s40 = sphi 0, %s39
    %s56 = sphi 0, %s40
    %s60 = sphi 0, %s60
    %s62 = sphi 0, %s60
    %s63 = sphi 0, %s62
    %s77 = sphi 0, %s63
    %s81 = sphi 0, %s81
    %s83 = sphi 0, %s81
    %s84 = sphi 0, %s83
    %s98 = sphi 0, %s84
    %s102 = sphi 0, %s102
    %s104 = sphi 0, %s102
    %s105 = sphi 0, %s104
    %s119 = sphi 0, %s105
    %s123 = sphi 0, %s123
    %s125 = sphi 0, %s123
    %s126 = sphi 0, %s125
    %s140 = sphi 0, %s126
    %s144 = sphi 0, %s144
    %s146 = sphi 0, %s144
    %s147 = sphi 0, %s146
    %s161 = sphi 0, %s147
    %s165 = sphi 0, %s165
    %s167 = sphi 0, %s165
    %s168 = sphi 0, %s167
    %s182 = sphi 0, %s168
    %s186 = sphi 0, %s186
    %s188 = sphi 0, %s186
    %s189 = sphi 0, %s188
    %s203 = sphi 0, %s189
    %s211 = sphi 0, %s213
    %s214 = sphi 0, %s211
    %s215 = sphi 0, %s214
    %s231 = sphi 0, %s215
  $region4: #{tpu_custom_call.1} parent=0 // loop_header_branch
    %17 = sbr.rel (%p15) target = $region8
  $region5: #{tpu_custom_call.1} parent=0 // loop_body
    %s19 = ssub.s32 %s14, 1
    %s20 = ssub.s32 %s14, 2
    %s27 = sadd.s32 1, %s22
    %p28 = scmp.ge.s32.totalorder %s27, 2
    %s29 = scalar_select %p28, 0, %s27
    %s30 = sadd.s32 1, %s21
    %s31 = scalar_select %p28, %s30, %s21
    %p32 = scmp.ge.s32.totalorder %s31, 2
    %s33 = scalar_select %p32, 0, %s31
    %s34 = ssub.s32 %s21, %s33
    %p35 = scmp.eq.s32.totalorder %s34, 0
    %s37 = sadd.s32 %s36, 1
    %s38 = scalar_select %p35, %s36, %s37
    %p41 = pneg %p35
    %p42 = scmp.eq.s32.totalorder %s14, 3
    %p43 = por %p41, %p42
    %p44 = scmp.ne.s32.totalorder %s36, %s39
    %p45 = scmp.eq.s32.totalorder %s14, 0
    %p46 = por %p44, %p45
    %p47 = scmp.ne.s32.totalorder %s36, %s39
    %p48 = scmp.eq.s32.totalorder %s19, 3
    %p49 = por %p47, %p48
    %p50 = scmp.ne.s32.totalorder %s39, %s40
    %p51 = scmp.eq.s32.totalorder %s19, 0
    %p52 = por %p50, %p51
    %p53 = scmp.ne.s32.totalorder %s39, %s40
    %p54 = scmp.eq.s32.totalorder %s20, 3
    %p55 = por %p53, %p54
    %p57 = scmp.ne.s32.totalorder %s40, %s56
    %p58 = scmp.eq.s32.totalorder %s20, 0
    %p59 = por %p57, %p58
    %s61 = sadd.s32 %s60, 1
    %p64 = scmp.eq.s32.totalorder %s14, 3
    %p65 = scmp.ne.s32.totalorder %s60, %s62
    %p66 = scmp.eq.s32.totalorder %s14, 0
    %p67 = por %p65, %p66
    %p68 = scmp.ne.s32.totalorder %s60, %s62
    %p69 = scmp.eq.s32.totalorder %s19, 3
    %p70 = por %p68, %p69
    %p71 = scmp.ne.s32.totalorder %s62, %s63
    %p72 = scmp.eq.s32.totalorder %s19, 0
    %p73 = por %p71, %p72
    %p74 = scmp.ne.s32.totalorder %s62, %s63
    %p75 = scmp.eq.s32.totalorder %s20, 3
    %p76 = por %p74, %p75
    %p78 = scmp.ne.s32.totalorder %s63, %s77
    %p79 = scmp.eq.s32.totalorder %s20, 0
    %p80 = por %p78, %p79
    %s82 = sadd.s32 %s81, 1
    %p85 = scmp.eq.s32.totalorder %s14, 3
    %p86 = scmp.ne.s32.totalorder %s81, %s83
    %p87 = scmp.eq.s32.totalorder %s14, 0
    %p88 = por %p86, %p87
    %p89 = scmp.ne.s32.totalorder %s81, %s83
    %p90 = scmp.eq.s32.totalorder %s19, 3
    %p91 = por %p89, %p90
    %p92 = scmp.ne.s32.totalorder %s83, %s84
    %p93 = scmp.eq.s32.totalorder %s19, 0
    %p94 = por %p92, %p93
    %p95 = scmp.ne.s32.totalorder %s83, %s84
    %p96 = scmp.eq.s32.totalorder %s20, 3
    %p97 = por %p95, %p96
    %p99 = scmp.ne.s32.totalorder %s84, %s98
    %p100 = scmp.eq.s32.totalorder %s20, 0
    %p101 = por %p99, %p100
    %s103 = sadd.s32 %s102, 1
    %p106 = scmp.eq.s32.totalorder %s14, 3
    %p107 = scmp.ne.s32.totalorder %s102, %s104
    %p108 = scmp.eq.s32.totalorder %s14, 0
    %p109 = por %p107, %p108
    %p110 = scmp.ne.s32.totalorder %s102, %s104
    %p111 = scmp.eq.s32.totalorder %s19, 3
    %p112 = por %p110, %p111
    %p113 = scmp.ne.s32.totalorder %s104, %s105
    %p114 = scmp.eq.s32.totalorder %s19, 0
    %p115 = por %p113, %p114
    %p116 = scmp.ne.s32.totalorder %s104, %s105
    %p117 = scmp.eq.s32.totalorder %s20, 3
    %p118 = por %p116, %p117
    %p120 = scmp.ne.s32.totalorder %s105, %s119
    %p121 = scmp.eq.s32.totalorder %s20, 0
    %p122 = por %p120, %p121
    %s124 = sadd.s32 %s123, 1
    %p127 = scmp.eq.s32.totalorder %s14, 3
    %p128 = scmp.ne.s32.totalorder %s123, %s125
    %p129 = scmp.eq.s32.totalorder %s14, 0
    %p130 = por %p128, %p129
    %p131 = scmp.ne.s32.totalorder %s123, %s125
    %p132 = scmp.eq.s32.totalorder %s19, 3
    %p133 = por %p131, %p132
    %p134 = scmp.ne.s32.totalorder %s125, %s126
    %p135 = scmp.eq.s32.totalorder %s19, 0
    %p136 = por %p134, %p135
    %p137 = scmp.ne.s32.totalorder %s125, %s126
    %p138 = scmp.eq.s32.totalorder %s20, 3
    %p139 = por %p137, %p138
    %p141 = scmp.ne.s32.totalorder %s126, %s140
    %p142 = scmp.eq.s32.totalorder %s20, 0
    %p143 = por %p141, %p142
    %s145 = sadd.s32 %s144, 1
    %p148 = scmp.eq.s32.totalorder %s14, 3
    %p149 = scmp.ne.s32.totalorder %s144, %s146
    %p150 = scmp.eq.s32.totalorder %s14, 0
    %p151 = por %p149, %p150
    %p152 = scmp.ne.s32.totalorder %s144, %s146
    %p153 = scmp.eq.s32.totalorder %s19, 3
    %p154 = por %p152, %p153
    %p155 = scmp.ne.s32.totalorder %s146, %s147
    %p156 = scmp.eq.s32.totalorder %s19, 0
    %p157 = por %p155, %p156
    %p158 = scmp.ne.s32.totalorder %s146, %s147
    %p159 = scmp.eq.s32.totalorder %s20, 3
    %p160 = por %p158, %p159
    %p162 = scmp.ne.s32.totalorder %s147, %s161
    %p163 = scmp.eq.s32.totalorder %s20, 0
    %p164 = por %p162, %p163
    %s166 = sadd.s32 %s165, 1
    %p169 = scmp.eq.s32.totalorder %s14, 3
    %p170 = scmp.ne.s32.totalorder %s165, %s167
    %p171 = scmp.eq.s32.totalorder %s14, 0
    %p172 = por %p170, %p171
    %p173 = scmp.ne.s32.totalorder %s165, %s167
    %p174 = scmp.eq.s32.totalorder %s19, 3
    %p175 = por %p173, %p174
    %p176 = scmp.ne.s32.totalorder %s167, %s168
    %p177 = scmp.eq.s32.totalorder %s19, 0
    %p178 = por %p176, %p177
    %p179 = scmp.ne.s32.totalorder %s167, %s168
    %p180 = scmp.eq.s32.totalorder %s20, 3
    %p181 = por %p179, %p180
    %p183 = scmp.ne.s32.totalorder %s168, %s182
    %p184 = scmp.eq.s32.totalorder %s20, 0
    %p185 = por %p183, %p184
    %s187 = sadd.s32 %s186, 1
    %p190 = scmp.eq.s32.totalorder %s14, 3
    %p191 = scmp.ne.s32.totalorder %s186, %s188
    %p192 = scmp.eq.s32.totalorder %s14, 0
    %p193 = por %p191, %p192
    %p194 = scmp.ne.s32.totalorder %s186, %s188
    %p195 = scmp.eq.s32.totalorder %s19, 3
    %p196 = por %p194, %p195
    %p197 = scmp.ne.s32.totalorder %s188, %s189
    %p198 = scmp.eq.s32.totalorder %s19, 0
    %p199 = por %p197, %p198
    %p200 = scmp.ne.s32.totalorder %s188, %s189
    %p201 = scmp.eq.s32.totalorder %s20, 3
    %p202 = por %p200, %p201
    %p204 = scmp.ne.s32.totalorder %s189, %s203
    %p205 = scmp.eq.s32.totalorder %s20, 0
    %p206 = por %p204, %p205
    %s207 = ssub.s32 %s21, %s33
    %s208 = ssub.s32 %s22, %s29
    %s209 = sor.u32 %s207, %s208
    %p210 = scmp.eq.s32.totalorder %s209, 0
    %s212 = sadd.s32 %s211, 1
    %s213 = scalar_select %p210, %s211, %s212
    %p216 = pneg %p210
    %p217 = scmp.eq.s32.totalorder %s14, 3
    %p218 = por %p216, %p217
    %p219 = scmp.ne.s32.totalorder %s211, %s214
    %p220 = scmp.eq.s32.totalorder %s14, 0
    %p221 = por %p219, %p220
    %p222 = scmp.ne.s32.totalorder %s211, %s214
    %p223 = scmp.eq.s32.totalorder %s19, 3
    %p224 = por %p222, %p223
    %p225 = scmp.ne.s32.totalorder %s214, %s215
    %p226 = scmp.eq.s32.totalorder %s19, 0
    %p227 = por %p225, %p226
    %p228 = scmp.ne.s32.totalorder %s214, %s215
    %p229 = scmp.eq.s32.totalorder %s20, 3
    %p230 = por %p228, %p229
    %p232 = scmp.ne.s32.totalorder %s215, %s231
    %p233 = scmp.eq.s32.totalorder %s20, 0
    %p234 = por %p232, %p233
    %p235 = scmp.le.s32.totalorder 1, %s14
    %p236 = scmp.lt.s32.totalorder %s14, 5
    %p237 = pnand %p235, %p236
    %p238 = pneg %p237
    // Predicated region
    $region9: #{tpu_custom_call.1} parent=5 // pred_check
      _
    $region10: #{tpu_custom_call.1} parent=5 // pred_check_branch
      %240 = sbr.rel (%p237) target = $region12
    $region11: #{tpu_custom_call.1} parent=5 // pred_region
      %s241 = ssub.s32 %s14, 1
      // Predicated region
      $region13: #{tpu_custom_call.1} parent=11 // pred_check
        %p242 = pneg %p73
      $region14: #{tpu_custom_call.1} parent=11 // pred_check_branch
        %244 = sbr.rel (%p242) target = $region16
      $region15: #{tpu_custom_call.1} parent=11 // pred_region
        _
      $region16: #{tpu_custom_call.1} parent=11 // pred_fallthru
        _
      // Predicated region
      $region17: #{tpu_custom_call.1} parent=11 // pred_check
        %p245 = pneg %p94
      $region18: #{tpu_custom_call.1} parent=11 // pred_check_branch
        %247 = sbr.rel (%p245) target = $region20
      $region19: #{tpu_custom_call.1} parent=11 // pred_region
        _
      $region20: #{tpu_custom_call.1} parent=11 // pred_fallthru
        _
      // Predicated region
      $region21: #{tpu_custom_call.1} parent=11 // pred_check
        %p248 = pneg %p115
      $region22: #{tpu_custom_call.1} parent=11 // pred_check_branch
        %250 = sbr.rel (%p248) target = $region24
      $region23: #{tpu_custom_call.1} parent=11 // pred_region
        _
      $region24: #{tpu_custom_call.1} parent=11 // pred_fallthru
        _
      // Predicated region
      $region25: #{tpu_custom_call.1} parent=11 // pred_check
        %p251 = pneg %p136
      $region26: #{tpu_custom_call.1} parent=11 // pred_check_branch
        %253 = sbr.rel (%p251) target = $region28
      $region27: #{tpu_custom_call.1} parent=11 // pred_region
        _
      $region28: #{tpu_custom_call.1} parent=11 // pred_fallthru
        _
      // Predicated region
      $region29: #{tpu_custom_call.1} parent=11 // pred_check
        %p254 = pneg %p157
      $region30: #{tpu_custom_call.1} parent=11 // pred_check_branch
        %256 = sbr.rel (%p254) target = $region32
      $region31: #{tpu_custom_call.1} parent=11 // pred_region
        _
      $region32: #{tpu_custom_call.1} parent=11 // pred_fallthru
        _
      // Predicated region
      $region33: #{tpu_custom_call.1} parent=11 // pred_check
        %p257 = pneg %p178
      $region34: #{tpu_custom_call.1} parent=11 // pred_check_branch
        %259 = sbr.rel (%p257) target = $region36
      $region35: #{tpu_custom_call.1} parent=11 // pred_region
        _
      $region36: #{tpu_custom_call.1} parent=11 // pred_fallthru
        _
      // Predicated region
      $region37: #{tpu_custom_call.1} parent=11 // pred_check
        %p260 = pneg %p199
      $region38: #{tpu_custom_call.1} parent=11 // pred_check_branch
        %262 = sbr.rel (%p260) target = $region40
      $region39: #{tpu_custom_call.1} parent=11 // pred_region
        _
      $region40: #{tpu_custom_call.1} parent=11 // pred_fallthru
        _
    $region12: #{tpu_custom_call.1} parent=5 // pred_fallthru
      _
    %p263 = scmp.lt.s32.totalorder %s14, 4
    // Predicated region
    $region41: #{tpu_custom_call.1} parent=5 // pred_check
      %p264 = pneg %p263
    $region42: #{tpu_custom_call.1} parent=5 // pred_check_branch
      %266 = sbr.rel (%p264) target = $region44
    $region43: #{tpu_custom_call.1} parent=5 // pred_region
      // Predicated region
      $region45: #{tpu_custom_call.1} parent=43 // pred_check
        %p267 = pneg %p46
      $region46: #{tpu_custom_call.1} parent=43 // pred_check_branch
        %269 = sbr.rel (%p267) target = $region48
      $region47: #{tpu_custom_call.1} parent=43 // pred_region
        %p270 = scmp.lt.s32.totalorder %s21, 1
        %s271 = scalar_select %p270, %s21, 1
        %s272 = smul.addr %s271, 88
        %s273 = smul.addr %s272, 8
        %s274 = scalar_lea.vmem %s0, %s273
      $region48: #{tpu_custom_call.1} parent=43 // pred_fallthru
        _
    $region44: #{tpu_custom_call.1} parent=5 // pred_fallthru
      _
    %p275 = scmp.le.s32.totalorder 1, %s14
    %p276 = scmp.lt.s32.totalorder %s14, 5
    %p277 = pnand %p275, %p276
    %p278 = pneg %p277
    // Predicated region
    $region49: #{tpu_custom_call.1} parent=5 // pred_check
      _
    $region50: #{tpu_custom_call.1} parent=5 // pred_check_branch
      %280 = sbr.rel (%p277) target = $region52
    $region51: #{tpu_custom_call.1} parent=5 // pred_region
      %s281 = ssub.s32 %s14, 1
      %p282 = scmp.lt.s32.totalorder %s23, 1
      %s283 = scalar_select %p282, %s23, 1
      %s284 = smul.addr %s283, 88
      %s285 = smul.addr %s284, 8
      %s286 = scalar_lea.vmem %s0, %s285
      %p287 = pneg %p52
      %p288 = pneg %p49
      %p289 = pneg %p73
      %p290 = pneg %p70
      %p291 = pneg %p94
      %p292 = pneg %p91
      %p293 = pneg %p115
      %p294 = pneg %p112
      %p295 = pneg %p136
      %p296 = pneg %p133
      %p297 = pneg %p157
      %p298 = pneg %p154
      %p299 = pneg %p178
      %p300 = pneg %p175
      %p301 = pneg %p199
      %p302 = pneg %p196
      %p303 = pneg %p227
      %p304 = pneg %p224
      %s305 = smul.u32 4, %s24
      %p306 = scmp.lt.s32.totalorder %s23, 1
      %s307 = scalar_select %p306, %s23, 1
      %p308 = scmp.lt.s32.totalorder %s305, 7
      %s309 = scalar_select %p308, %s305, 7
      %s310 = smul.addr %s307, 8
      %s311 = sadd.s32 %s309, %s310
      %s312 = smul.addr %s311, 8
      %s313 = scalar_lea.vmem %s8, %s312
      %p314 = scmp.lt.s32.totalorder %s23, 1
      %s315 = scalar_select %p314, %s23, 1
      %s316 = smul.addr %s315, 88
      %s317 = smul.addr %s316, 8
      %s318 = scalar_lea.vmem %s0, %s317
      %s319 = smul.u32 4, %s24
      %p320 = scmp.lt.s32.totalorder %s23, 1
      %s321 = scalar_select %p320, %s23, 1
      %p322 = scmp.lt.s32.totalorder %s319, 7
      %s323 = scalar_select %p322, %s319, 7
      %s324 = smul.addr %s321, 8
      %s325 = sadd.s32 %s323, %s324
      %s326 = smul.addr %s325, 8
      %s327 = scalar_lea.vmem %s8, %s326
      %s328 = smul.u32 4, %s24
      %s329 = smul.u32 %s24, 4
      %s330 = smul.u32 %s329, 16
      %s331 = scalar_lea.vmem %s318, %s330
      %v332 = vld [vmem:[%s331] sm:$0xff]
      %v333 = vld [vmem:[%s331 + $0x10] sm:$0xff]
      %v334 = vld [vmem:[%s331 + $0x20] sm:$0xff]
      %v335 = vld [vmem:[%s331 + $0x30] sm:$0xff]
      %v336 = vld [vmem:[%s331 + $0x40] sm:$0xff]
      %v337 = vld [vmem:[%s331 + $0x50] sm:$0xff]
      %v338 = vld [vmem:[%s331 + $0x60] sm:$0xff]
      %346 = vrot.lane.b32.xlu0 %v332, 4
      %v347 = vpop.permute.xlu0 %346
      %348 = vrot.lane.b32.xlu0 %v333, 4
      %v349 = vpop.permute.xlu0 %348
      %350 = vrot.lane.b32.xlu0 %v334, 4
      %v351 = vpop.permute.xlu0 %350
      %352 = vrot.lane.b32.xlu0 %v335, 4
      %v353 = vpop.permute.xlu0 %352
      %354 = vrot.lane.b32.xlu0 %v336, 4
      %v355 = vpop.permute.xlu0 %354
      %356 = vrot.lane.b32.xlu0 %v337, 4
      %v357 = vpop.permute.xlu0 %356
      %358 = vrot.lane.b32.xlu0 %v338, 4
      %v359 = vpop.permute.xlu0 %358
      %vm367 = vcmask 31744
      %v368 = vsel %vm367, %v332, %v347
      %v369 = vsel %vm367, %v333, %v349
      %v370 = vsel %vm367, %v334, %v351
      %v371 = vsel %vm367, %v335, %v353
      %v372 = vsel %vm367, %v336, %v355
      %v373 = vsel %vm367, %v337, %v357
      %v374 = vsel %vm367, %v338, %v359
      %v375 = vld [vmem:[%s1] sm:$0x1]
      %v376 = vlaneseq
      %v377 = vshrl.u32 %v376, 7
      %v378 = vsub.s32 0, %v377
      %v379 = vrot.slane %v375, %v378
      %v380 = vmul.f32 %v368, %v379
      %v381 = vmul.f32 %v369, %v379
      %v382 = vmul.f32 %v370, %v379
      %v383 = vmul.f32 %v371, %v379
      %v384 = vadd.f32 %v380, 0.0
      %v385 = vadd.f32 %v381, 0.0
      %v386 = vadd.f32 %v382, 0.0
      %v387 = vadd.f32 %v383, 0.0
      %s388 = scalar_lea.vmem %s1, 16
      %v389 = vld [vmem:[%s388] sm:$0x1]
      %v390 = vlaneseq
      %v391 = vshrl.u32 %v390, 7
      %v392 = vsub.s32 0, %v391
      %v393 = vrot.slane %v389, %v392
      %v394 = vmul.f32 %v369, %v393
      %v395 = vmul.f32 %v370, %v393
      %v396 = vmul.f32 %v371, %v393
      %v397 = vmul.f32 %v372, %v393
      %v398 = vadd.f32 %v384, %v394
      %v399 = vadd.f32 %v385, %v395
      %v400 = vadd.f32 %v386, %v396
      %v401 = vadd.f32 %v387, %v397
      %s402 = scalar_lea.vmem %s1, 32
      %v403 = vld [vmem:[%s402] sm:$0x1]
      %v404 = vlaneseq
      %v405 = vshrl.u32 %v404, 7
      %v406 = vsub.s32 0, %v405
      %v407 = vrot.slane %v403, %v406
      %v408 = vmul.f32 %v370, %v407
      %v409 = vmul.f32 %v371, %v407
      %v410 = vmul.f32 %v372, %v407
      %v411 = vmul.f32 %v373, %v407
      %v412 = vadd.f32 %v398, %v408
      %v413 = vadd.f32 %v399, %v409
      %v414 = vadd.f32 %v400, %v410
      %v415 = vadd.f32 %v401, %v411
      %s416 = scalar_lea.vmem %s1, 48
      %v417 = vld [vmem:[%s416] sm:$0x1]
      %v418 = vlaneseq
      %v419 = vshrl.u32 %v418, 7
      %v420 = vsub.s32 0, %v419
      %v421 = vrot.slane %v417, %v420
      %v422 = vmul.f32 %v371, %v421
      %v423 = vmul.f32 %v372, %v421
      %v424 = vmul.f32 %v373, %v421
      %v425 = vmul.f32 %v374, %v421
      %v426 = vadd.f32 %v412, %v422
      %v427 = vadd.f32 %v413, %v423
      %v428 = vadd.f32 %v414, %v424
      %v429 = vadd.f32 %v415, %v425
      %s430 = sadd.s32 %s330, 176
      %s431 = scalar_lea.vmem %s318, %s430
      %v432 = vld [vmem:[%s431] sm:$0xff]
      %v433 = vld [vmem:[%s431 + $0x10] sm:$0xff]
      %v434 = vld [vmem:[%s431 + $0x20] sm:$0xff]
      %v435 = vld [vmem:[%s431 + $0x30] sm:$0xff]
      %v436 = vld [vmem:[%s431 + $0x40] sm:$0xff]
      %v437 = vld [vmem:[%s431 + $0x50] sm:$0xff]
      %v438 = vld [vmem:[%s431 + $0x60] sm:$0xff]
      %446 = vrot.lane.b32.xlu0 %v432, 4
      %v447 = vpop.permute.xlu0 %446
      %448 = vrot.lane.b32.xlu0 %v433, 4
      %v449 = vpop.permute.xlu0 %448
      %450 = vrot.lane.b32.xlu0 %v434, 4
      %v451 = vpop.permute.xlu0 %450
      %452 = vrot.lane.b32.xlu0 %v435, 4
      %v453 = vpop.permute.xlu0 %452
      %454 = vrot.lane.b32.xlu0 %v436, 4
      %v455 = vpop.permute.xlu0 %454
      %456 = vrot.lane.b32.xlu0 %v437, 4
      %v457 = vpop.permute.xlu0 %456
      %458 = vrot.lane.b32.xlu0 %v438, 4
      %v459 = vpop.permute.xlu0 %458
      %v467 = vsel %vm367, %v432, %v447
      %v468 = vsel %vm367, %v433, %v449
      %v469 = vsel %vm367, %v434, %v451
      %v470 = vsel %vm367, %v435, %v453
      %v471 = vsel %vm367, %v436, %v455
      %v472 = vsel %vm367, %v437, %v457
      %v473 = vsel %vm367, %v438, %v459
      %v474 = vld [vmem:[%s1 + $0x1] sm:$0x1]
      %v475 = vlaneseq
      %v476 = vshrl.u32 %v475, 7
      %v477 = vsub.s32 0, %v476
      %v478 = vrot.slane %v474, %v477
      %v479 = vmul.f32 %v467, %v478
      %v480 = vmul.f32 %v468, %v478
      %v481 = vmul.f32 %v469, %v478
      %v482 = vmul.f32 %v470, %v478
      %v483 = vadd.f32 %v426, %v479
      %v484 = vadd.f32 %v427, %v480
      %v485 = vadd.f32 %v428, %v481
      %v486 = vadd.f32 %v429, %v482
      %v487 = vld [vmem:[%s388 + $0x1] sm:$0x1]
      %v488 = vlaneseq
      %v489 = vshrl.u32 %v488, 7
      %v490 = vsub.s32 0, %v489
      %v491 = vrot.slane %v487, %v490
      %v492 = vmul.f32 %v468, %v491
      %v493 = vmul.f32 %v469, %v491
      %v494 = vmul.f32 %v470, %v491
      %v495 = vmul.f32 %v471, %v491
      %v496 = vadd.f32 %v483, %v492
      %v497 = vadd.f32 %v484, %v493
      %v498 = vadd.f32 %v485, %v494
      %v499 = vadd.f32 %v486, %v495
      %v500 = vld [vmem:[%s402 + $0x1] sm:$0x1]
      %v501 = vlaneseq
      %v502 = vshrl.u32 %v501, 7
      %v503 = vsub.s32 0, %v502
      %v504 = vrot.slane %v500, %v503
      %v505 = vmul.f32 %v469, %v504
      %v506 = vmul.f32 %v470, %v504
      %v507 = vmul.f32 %v471, %v504
      %v508 = vmul.f32 %v472, %v504
      %v509 = vadd.f32 %v496, %v505
      %v510 = vadd.f32 %v497, %v506
      %v511 = vadd.f32 %v498, %v507
      %v512 = vadd.f32 %v499, %v508
      %v513 = vld [vmem:[%s416 + $0x1] sm:$0x1]
      %v514 = vlaneseq
      %v515 = vshrl.u32 %v514, 7
      %v516 = vsub.s32 0, %v515
      %v517 = vrot.slane %v513, %v516
      %v518 = vmul.f32 %v470, %v517
      %v519 = vmul.f32 %v471, %v517
      %v520 = vmul.f32 %v472, %v517
      %v521 = vmul.f32 %v473, %v517
      %v522 = vadd.f32 %v509, %v518
      %v523 = vadd.f32 %v510, %v519
      %v524 = vadd.f32 %v511, %v520
      %v525 = vadd.f32 %v512, %v521
      %v526 = vld [vmem:[%s331 + $0x1] sm:$0xff]
      %v527 = vld [vmem:[%s331 + $0x11] sm:$0xff]
      %v528 = vld [vmem:[%s331 + $0x21] sm:$0xff]
      %v529 = vld [vmem:[%s331 + $0x31] sm:$0xff]
      %v530 = vld [vmem:[%s331 + $0x41] sm:$0xff]
      %v531 = vld [vmem:[%s331 + $0x51] sm:$0xff]
      %v532 = vld [vmem:[%s331 + $0x61] sm:$0xff]
      %540 = vrot.lane.b32.xlu0 %v526, 4
      %v541 = vpop.permute.xlu0 %540
      %542 = vrot.lane.b32.xlu0 %v527, 4
      %v543 = vpop.permute.xlu0 %542
      %544 = vrot.lane.b32.xlu0 %v528, 4
      %v545 = vpop.permute.xlu0 %544
      %546 = vrot.lane.b32.xlu0 %v529, 4
      %v547 = vpop.permute.xlu0 %546
      %548 = vrot.lane.b32.xlu0 %v530, 4
      %v549 = vpop.permute.xlu0 %548
      %550 = vrot.lane.b32.xlu0 %v531, 4
      %v551 = vpop.permute.xlu0 %550
      %552 = vrot.lane.b32.xlu0 %v532, 4
      %v553 = vpop.permute.xlu0 %552
      %v561 = vsel %vm367, %v526, %v541
      %v562 = vsel %vm367, %v527, %v543
      %v563 = vsel %vm367, %v528, %v545
      %v564 = vsel %vm367, %v529, %v547
      %v565 = vsel %vm367, %v530, %v549
      %v566 = vsel %vm367, %v531, %v551
      %v567 = vsel %vm367, %v532, %v553
      %v568 = vld [vmem:[%s1 + $0x2] sm:$0x1]
      %v569 = vlaneseq
      %v570 = vshrl.u32 %v569, 7
      %v571 = vsub.s32 0, %v570
      %v572 = vrot.slane %v568, %v571
      %v573 = vmul.f32 %v561, %v572
      %v574 = vmul.f32 %v562, %v572
      %v575 = vmul.f32 %v563, %v572
      %v576 = vmul.f32 %v564, %v572
      %v577 = vadd.f32 %v522, %v573
      %v578 = vadd.f32 %v523, %v574
      %v579 = vadd.f32 %v524, %v575
      %v580 = vadd.f32 %v525, %v576
      %v581 = vld [vmem:[%s388 + $0x2] sm:$0x1]
      %v582 = vlaneseq
      %v583 = vshrl.u32 %v582, 7
      %v584 = vsub.s32 0, %v583
      %v585 = vrot.slane %v581, %v584
      %v586 = vmul.f32 %v562, %v585
      %v587 = vmul.f32 %v563, %v585
      %v588 = vmul.f32 %v564, %v585
      %v589 = vmul.f32 %v565, %v585
      %v590 = vadd.f32 %v577, %v586
      %v591 = vadd.f32 %v578, %v587
      %v592 = vadd.f32 %v579, %v588
      %v593 = vadd.f32 %v580, %v589
      %v594 = vld [vmem:[%s402 + $0x2] sm:$0x1]
      %v595 = vlaneseq
      %v596 = vshrl.u32 %v595, 7
      %v597 = vsub.s32 0, %v596
      %v598 = vrot.slane %v594, %v597
      %v599 = vmul.f32 %v563, %v598
      %v600 = vmul.f32 %v564, %v598
      %v601 = vmul.f32 %v565, %v598
      %v602 = vmul.f32 %v566, %v598
      %v603 = vadd.f32 %v590, %v599
      %v604 = vadd.f32 %v591, %v600
      %v605 = vadd.f32 %v592, %v601
      %v606 = vadd.f32 %v593, %v602
      %v607 = vld [vmem:[%s416 + $0x2] sm:$0x1]
      %v608 = vlaneseq
      %v609 = vshrl.u32 %v608, 7
      %v610 = vsub.s32 0, %v609
      %v611 = vrot.slane %v607, %v610
      %v612 = vmul.f32 %v564, %v611
      %v613 = vmul.f32 %v565, %v611
      %v614 = vmul.f32 %v566, %v611
      %v615 = vmul.f32 %v567, %v611
      %v616 = vadd.f32 %v603, %v612
      %v617 = vadd.f32 %v604, %v613
      %v618 = vadd.f32 %v605, %v614
      %v619 = vadd.f32 %v606, %v615
      %v620 = vld [vmem:[%s431 + $0x1] sm:$0xff]
      %v621 = vld [vmem:[%s431 + $0x11] sm:$0xff]
      %v622 = vld [vmem:[%s431 + $0x21] sm:$0xff]
      %v623 = vld [vmem:[%s431 + $0x31] sm:$0xff]
      %v624 = vld [vmem:[%s431 + $0x41] sm:$0xff]
      %v625 = vld [vmem:[%s431 + $0x51] sm:$0xff]
      %v626 = vld [vmem:[%s431 + $0x61] sm:$0xff]
      %634 = vrot.lane.b32.xlu0 %v620, 4
      %v635 = vpop.permute.xlu0 %634
      %636 = vrot.lane.b32.xlu0 %v621, 4
      %v637 = vpop.permute.xlu0 %636
      %638 = vrot.lane.b32.xlu0 %v622, 4
      %v639 = vpop.permute.xlu0 %638
      %640 = vrot.lane.b32.xlu0 %v623, 4
      %v641 = vpop.permute.xlu0 %640
      %642 = vrot.lane.b32.xlu0 %v624, 4
      %v643 = vpop.permute.xlu0 %642
      %644 = vrot.lane.b32.xlu0 %v625, 4
      %v645 = vpop.permute.xlu0 %644
      %646 = vrot.lane.b32.xlu0 %v626, 4
      %v647 = vpop.permute.xlu0 %646
      %v655 = vsel %vm367, %v620, %v635
      %v656 = vsel %vm367, %v621, %v637
      %v657 = vsel %vm367, %v622, %v639
      %v658 = vsel %vm367, %v623, %v641
      %v659 = vsel %vm367, %v624, %v643
      %v660 = vsel %vm367, %v625, %v645
      %v661 = vsel %vm367, %v626, %v647
      %v662 = vld [vmem:[%s1 + $0x3] sm:$0x1]
      %v663 = vlaneseq
      %v664 = vshrl.u32 %v663, 7
      %v665 = vsub.s32 0, %v664
      %v666 = vrot.slane %v662, %v665
      %v667 = vmul.f32 %v655, %v666
      %v668 = vmul.f32 %v656, %v666
      %v669 = vmul.f32 %v657, %v666
      %v670 = vmul.f32 %v658, %v666
      %v671 = vadd.f32 %v616, %v667
      %v672 = vadd.f32 %v617, %v668
      %v673 = vadd.f32 %v618, %v669
      %v674 = vadd.f32 %v619, %v670
      %v675 = vld [vmem:[%s388 + $0x3] sm:$0x1]
      %v676 = vlaneseq
      %v677 = vshrl.u32 %v676, 7
      %v678 = vsub.s32 0, %v677
      %v679 = vrot.slane %v675, %v678
      %v680 = vmul.f32 %v656, %v679
      %v681 = vmul.f32 %v657, %v679
      %v682 = vmul.f32 %v658, %v679
      %v683 = vmul.f32 %v659, %v679
      %v684 = vadd.f32 %v671, %v680
      %v685 = vadd.f32 %v672, %v681
      %v686 = vadd.f32 %v673, %v682
      %v687 = vadd.f32 %v674, %v683
      %v688 = vld [vmem:[%s402 + $0x3] sm:$0x1]
      %v689 = vlaneseq
      %v690 = vshrl.u32 %v689, 7
      %v691 = vsub.s32 0, %v690
      %v692 = vrot.slane %v688, %v691
      %v693 = vmul.f32 %v657, %v692
      %v694 = vmul.f32 %v658, %v692
      %v695 = vmul.f32 %v659, %v692
      %v696 = vmul.f32 %v660, %v692
      %v697 = vadd.f32 %v684, %v693
      %v698 = vadd.f32 %v685, %v694
      %v699 = vadd.f32 %v686, %v695
      %v700 = vadd.f32 %v687, %v696
      %v701 = vld [vmem:[%s416 + $0x3] sm:$0x1]
      %v702 = vlaneseq
      %v703 = vshrl.u32 %v702, 7
      %v704 = vsub.s32 0, %v703
      %v705 = vrot.slane %v701, %v704
      %v706 = vmul.f32 %v658, %v705
      %v707 = vmul.f32 %v659, %v705
      %v708 = vmul.f32 %v660, %v705
      %v709 = vmul.f32 %v661, %v705
      %v710 = vadd.f32 %v697, %v706
      %v711 = vadd.f32 %v698, %v707
      %v712 = vadd.f32 %v699, %v708
      %v713 = vadd.f32 %v700, %v709
      %v714 = vld [vmem:[%s331 + $0x2] sm:$0xff]
      %v715 = vld [vmem:[%s331 + $0x12] sm:$0xff]
      %v716 = vld [vmem:[%s331 + $0x22] sm:$0xff]
      %v717 = vld [vmem:[%s331 + $0x32] sm:$0xff]
      %v718 = vld [vmem:[%s331 + $0x42] sm:$0xff]
      %v719 = vld [vmem:[%s331 + $0x52] sm:$0xff]
      %v720 = vld [vmem:[%s331 + $0x62] sm:$0xff]
      %728 = vrot.lane.b32.xlu0 %v714, 4
      %v729 = vpop.permute.xlu0 %728
      %730 = vrot.lane.b32.xlu0 %v715, 4
      %v731 = vpop.permute.xlu0 %730
      %732 = vrot.lane.b32.xlu0 %v716, 4
      %v733 = vpop.permute.xlu0 %732
      %734 = vrot.lane.b32.xlu0 %v717, 4
      %v735 = vpop.permute.xlu0 %734
      %736 = vrot.lane.b32.xlu0 %v718, 4
      %v737 = vpop.permute.xlu0 %736
      %738 = vrot.lane.b32.xlu0 %v719, 4
      %v739 = vpop.permute.xlu0 %738
      %740 = vrot.lane.b32.xlu0 %v720, 4
      %v741 = vpop.permute.xlu0 %740
      %v749 = vsel %vm367, %v714, %v729
      %v750 = vsel %vm367, %v715, %v731
      %v751 = vsel %vm367, %v716, %v733
      %v752 = vsel %vm367, %v717, %v735
      %v753 = vsel %vm367, %v718, %v737
      %v754 = vsel %vm367, %v719, %v739
      %v755 = vsel %vm367, %v720, %v741
      %v756 = vld [vmem:[%s1 + $0x4] sm:$0x1]
      %v757 = vlaneseq
      %v758 = vshrl.u32 %v757, 7
      %v759 = vsub.s32 0, %v758
      %v760 = vrot.slane %v756, %v759
      %v761 = vmul.f32 %v749, %v760
      %v762 = vmul.f32 %v750, %v760
      %v763 = vmul.f32 %v751, %v760
      %v764 = vmul.f32 %v752, %v760
      %v765 = vadd.f32 %v710, %v761
      %v766 = vadd.f32 %v711, %v762
      %v767 = vadd.f32 %v712, %v763
      %v768 = vadd.f32 %v713, %v764
      %v769 = vld [vmem:[%s388 + $0x4] sm:$0x1]
      %v770 = vlaneseq
      %v771 = vshrl.u32 %v770, 7
      %v772 = vsub.s32 0, %v771
      %v773 = vrot.slane %v769, %v772
      %v774 = vmul.f32 %v750, %v773
      %v775 = vmul.f32 %v751, %v773
      %v776 = vmul.f32 %v752, %v773
      %v777 = vmul.f32 %v753, %v773
      %v778 = vadd.f32 %v765, %v774
      %v779 = vadd.f32 %v766, %v775
      %v780 = vadd.f32 %v767, %v776
      %v781 = vadd.f32 %v768, %v777
      %v782 = vld [vmem:[%s402 + $0x4] sm:$0x1]
      %v783 = vlaneseq
      %v784 = vshrl.u32 %v783, 7
      %v785 = vsub.s32 0, %v784
      %v786 = vrot.slane %v782, %v785
      %v787 = vmul.f32 %v751, %v786
      %v788 = vmul.f32 %v752, %v786
      %v789 = vmul.f32 %v753, %v786
      %v790 = vmul.f32 %v754, %v786
      %v791 = vadd.f32 %v778, %v787
      %v792 = vadd.f32 %v779, %v788
      %v793 = vadd.f32 %v780, %v789
      %v794 = vadd.f32 %v781, %v790
      %v795 = vld [vmem:[%s416 + $0x4] sm:$0x1]
      %v796 = vlaneseq
      %v797 = vshrl.u32 %v796, 7
      %v798 = vsub.s32 0, %v797
      %v799 = vrot.slane %v795, %v798
      %v800 = vmul.f32 %v752, %v799
      %v801 = vmul.f32 %v753, %v799
      %v802 = vmul.f32 %v754, %v799
      %v803 = vmul.f32 %v755, %v799
      %v804 = vadd.f32 %v791, %v800
      %v805 = vadd.f32 %v792, %v801
      %v806 = vadd.f32 %v793, %v802
      %v807 = vadd.f32 %v794, %v803
      %v808 = vld [vmem:[%s431 + $0x2] sm:$0xff]
      %v809 = vld [vmem:[%s431 + $0x12] sm:$0xff]
      %v810 = vld [vmem:[%s431 + $0x22] sm:$0xff]
      %v811 = vld [vmem:[%s431 + $0x32] sm:$0xff]
      %v812 = vld [vmem:[%s431 + $0x42] sm:$0xff]
      %v813 = vld [vmem:[%s431 + $0x52] sm:$0xff]
      %v814 = vld [vmem:[%s431 + $0x62] sm:$0xff]
      %822 = vrot.lane.b32.xlu0 %v808, 4
      %v823 = vpop.permute.xlu0 %822
      %824 = vrot.lane.b32.xlu0 %v809, 4
      %v825 = vpop.permute.xlu0 %824
      %826 = vrot.lane.b32.xlu0 %v810, 4
      %v827 = vpop.permute.xlu0 %826
      %828 = vrot.lane.b32.xlu0 %v811, 4
      %v829 = vpop.permute.xlu0 %828
      %830 = vrot.lane.b32.xlu0 %v812, 4
      %v831 = vpop.permute.xlu0 %830
      %832 = vrot.lane.b32.xlu0 %v813, 4
      %v833 = vpop.permute.xlu0 %832
      %834 = vrot.lane.b32.xlu0 %v814, 4
      %v835 = vpop.permute.xlu0 %834
      %v843 = vsel %vm367, %v808, %v823
      %v844 = vsel %vm367, %v809, %v825
      %v845 = vsel %vm367, %v810, %v827
      %v846 = vsel %vm367, %v811, %v829
      %v847 = vsel %vm367, %v812, %v831
      %v848 = vsel %vm367, %v813, %v833
      %v849 = vsel %vm367, %v814, %v835
      %v850 = vld [vmem:[%s1 + $0x5] sm:$0x1]
      %v851 = vlaneseq
      %v852 = vshrl.u32 %v851, 7
      %v853 = vsub.s32 0, %v852
      %v854 = vrot.slane %v850, %v853
      %v855 = vmul.f32 %v843, %v854
      %v856 = vmul.f32 %v844, %v854
      %v857 = vmul.f32 %v845, %v854
      %v858 = vmul.f32 %v846, %v854
      %v859 = vadd.f32 %v804, %v855
      %v860 = vadd.f32 %v805, %v856
      %v861 = vadd.f32 %v806, %v857
      %v862 = vadd.f32 %v807, %v858
      %v863 = vld [vmem:[%s388 + $0x5] sm:$0x1]
      %v864 = vlaneseq
      %v865 = vshrl.u32 %v864, 7
      %v866 = vsub.s32 0, %v865
      %v867 = vrot.slane %v863, %v866
      %v868 = vmul.f32 %v844, %v867
      %v869 = vmul.f32 %v845, %v867
      %v870 = vmul.f32 %v846, %v867
      %v871 = vmul.f32 %v847, %v867
      %v872 = vadd.f32 %v859, %v868
      %v873 = vadd.f32 %v860, %v869
      %v874 = vadd.f32 %v861, %v870
      %v875 = vadd.f32 %v862, %v871
      %v876 = vld [vmem:[%s402 + $0x5] sm:$0x1]
      %v877 = vlaneseq
      %v878 = vshrl.u32 %v877, 7
      %v879 = vsub.s32 0, %v878
      %v880 = vrot.slane %v876, %v879
      %v881 = vmul.f32 %v845, %v880
      %v882 = vmul.f32 %v846, %v880
      %v883 = vmul.f32 %v847, %v880
      %v884 = vmul.f32 %v848, %v880
      %v885 = vadd.f32 %v872, %v881
      %v886 = vadd.f32 %v873, %v882
      %v887 = vadd.f32 %v874, %v883
      %v888 = vadd.f32 %v875, %v884
      %v889 = vld [vmem:[%s416 + $0x5] sm:$0x1]
      %v890 = vlaneseq
      %v891 = vshrl.u32 %v890, 7
      %v892 = vsub.s32 0, %v891
      %v893 = vrot.slane %v889, %v892
      %v894 = vmul.f32 %v846, %v893
      %v895 = vmul.f32 %v847, %v893
      %v896 = vmul.f32 %v848, %v893
      %v897 = vmul.f32 %v849, %v893
      %v898 = vadd.f32 %v885, %v894
      %v899 = vadd.f32 %v886, %v895
      %v900 = vadd.f32 %v887, %v896
      %v901 = vadd.f32 %v888, %v897
      %v902 = vld [vmem:[%s331 + $0x3] sm:$0xff]
      %v903 = vld [vmem:[%s331 + $0x13] sm:$0xff]
      %v904 = vld [vmem:[%s331 + $0x23] sm:$0xff]
      %v905 = vld [vmem:[%s331 + $0x33] sm:$0xff]
      %v906 = vld [vmem:[%s331 + $0x43] sm:$0xff]
      %v907 = vld [vmem:[%s331 + $0x53] sm:$0xff]
      %v908 = vld [vmem:[%s331 + $0x63] sm:$0xff]
      %916 = vrot.lane.b32.xlu0 %v902, 4
      %v917 = vpop.permute.xlu0 %916
      %918 = vrot.lane.b32.xlu0 %v903, 4
      %v919 = vpop.permute.xlu0 %918
      %920 = vrot.lane.b32.xlu0 %v904, 4
      %v921 = vpop.permute.xlu0 %920
      %922 = vrot.lane.b32.xlu0 %v905, 4
      %v923 = vpop.permute.xlu0 %922
      %924 = vrot.lane.b32.xlu0 %v906, 4
      %v925 = vpop.permute.xlu0 %924
      %926 = vrot.lane.b32.xlu0 %v907, 4
      %v927 = vpop.permute.xlu0 %926
      %928 = vrot.lane.b32.xlu0 %v908, 4
      %v929 = vpop.permute.xlu0 %928
      %v937 = vsel %vm367, %v902, %v917
      %v938 = vsel %vm367, %v903, %v919
      %v939 = vsel %vm367, %v904, %v921
      %v940 = vsel %vm367, %v905, %v923
      %v941 = vsel %vm367, %v906, %v925
      %v942 = vsel %vm367, %v907, %v927
      %v943 = vsel %vm367, %v908, %v929
      %v944 = vld [vmem:[%s1 + $0x6] sm:$0x1]
      %v945 = vlaneseq
      %v946 = vshrl.u32 %v945, 7
      %v947 = vsub.s32 0, %v946
      %v948 = vrot.slane %v944, %v947
      %v949 = vmul.f32 %v937, %v948
      %v950 = vmul.f32 %v938, %v948
      %v951 = vmul.f32 %v939, %v948
      %v952 = vmul.f32 %v940, %v948
      %v953 = vadd.f32 %v898, %v949
      %v954 = vadd.f32 %v899, %v950
      %v955 = vadd.f32 %v900, %v951
      %v956 = vadd.f32 %v901, %v952
      %v957 = vld [vmem:[%s388 + $0x6] sm:$0x1]
      %v958 = vlaneseq
      %v959 = vshrl.u32 %v958, 7
      %v960 = vsub.s32 0, %v959
      %v961 = vrot.slane %v957, %v960
      %v962 = vmul.f32 %v938, %v961
      %v963 = vmul.f32 %v939, %v961
      %v964 = vmul.f32 %v940, %v961
      %v965 = vmul.f32 %v941, %v961
      %v966 = vadd.f32 %v953, %v962
      %v967 = vadd.f32 %v954, %v963
      %v968 = vadd.f32 %v955, %v964
      %v969 = vadd.f32 %v956, %v965
      %v970 = vld [vmem:[%s402 + $0x6] sm:$0x1]
      %v971 = vlaneseq
      %v972 = vshrl.u32 %v971, 7
      %v973 = vsub.s32 0, %v972
      %v974 = vrot.slane %v970, %v973
      %v975 = vmul.f32 %v939, %v974
      %v976 = vmul.f32 %v940, %v974
      %v977 = vmul.f32 %v941, %v974
      %v978 = vmul.f32 %v942, %v974
      %v979 = vadd.f32 %v966, %v975
      %v980 = vadd.f32 %v967, %v976
      %v981 = vadd.f32 %v968, %v977
      %v982 = vadd.f32 %v969, %v978
      %v983 = vld [vmem:[%s416 + $0x6] sm:$0x1]
      %v984 = vlaneseq
      %v985 = vshrl.u32 %v984, 7
      %v986 = vsub.s32 0, %v985
      %v987 = vrot.slane %v983, %v986
      %v988 = vmul.f32 %v940, %v987
      %v989 = vmul.f32 %v941, %v987
      %v990 = vmul.f32 %v942, %v987
      %v991 = vmul.f32 %v943, %v987
      %v992 = vadd.f32 %v979, %v988
      %v993 = vadd.f32 %v980, %v989
      %v994 = vadd.f32 %v981, %v990
      %v995 = vadd.f32 %v982, %v991
      %s996 = sadd.s32 %s330, 352
      %s997 = scalar_lea.vmem %s318, %s996
      %v998 = vld [vmem:[%s997] sm:$0xff]
      %v999 = vld [vmem:[%s997 + $0x10] sm:$0xff]
      %v1000 = vld [vmem:[%s997 + $0x20] sm:$0xff]
      %v1001 = vld [vmem:[%s997 + $0x30] sm:$0xff]
      %v1002 = vld [vmem:[%s997 + $0x40] sm:$0xff]
      %v1003 = vld [vmem:[%s997 + $0x50] sm:$0xff]
      %1010 = vrot.lane.b32.xlu0 %v998, 4
      %v1011 = vpop.permute.xlu0 %1010
      %1012 = vrot.lane.b32.xlu0 %v999, 4
      %v1013 = vpop.permute.xlu0 %1012
      %1014 = vrot.lane.b32.xlu0 %v1000, 4
      %v1015 = vpop.permute.xlu0 %1014
      %1016 = vrot.lane.b32.xlu0 %v1001, 4
      %v1017 = vpop.permute.xlu0 %1016
      %1018 = vrot.lane.b32.xlu0 %v1002, 4
      %v1019 = vpop.permute.xlu0 %1018
      %1020 = vrot.lane.b32.xlu0 %v1003, 4
      %v1021 = vpop.permute.xlu0 %1020
      %v1028 = vsel %vm367, %v998, %v1011
      %v1029 = vsel %vm367, %v999, %v1013
      %v1030 = vsel %vm367, %v1000, %v1015
      %v1031 = vsel %vm367, %v1001, %v1017
      %v1032 = vsel %vm367, %v1002, %v1019
      %v1033 = vsel %vm367, %v1003, %v1021
      %s1034 = scalar_lea.vmem %s1, 8
      %v1035 = vld [vmem:[%s1034] sm:$0x1]
      %v1036 = vlaneseq
      %v1037 = vshrl.u32 %v1036, 7
      %v1038 = vsub.s32 0, %v1037
      %v1039 = vrot.slane %v1035, %v1038
      %v1040 = vmul.f32 %v1028, %v1039
      %v1041 = vmul.f32 %v1029, %v1039
      %v1042 = vmul.f32 %v1030, %v1039
      %v1043 = vmul.f32 %v1031, %v1039
      %v1044 = vadd.f32 %v992, %v1040
      %v1045 = vadd.f32 %v993, %v1041
      %v1046 = vadd.f32 %v994, %v1042
      %v1047 = vadd.f32 %v995, %v1043
      %s1048 = scalar_lea.vmem %s1, 24
      %v1049 = vld [vmem:[%s1048] sm:$0x1]
      %v1050 = vlaneseq
      %v1051 = vshrl.u32 %v1050, 7
      %v1052 = vsub.s32 0, %v1051
      %v1053 = vrot.slane %v1049, %v1052
      %v1054 = vmul.f32 %v1029, %v1053
      %v1055 = vmul.f32 %v1030, %v1053
      %v1056 = vmul.f32 %v1031, %v1053
      %v1057 = vmul.f32 %v1032, %v1053
      %v1058 = vadd.f32 %v1044, %v1054
      %v1059 = vadd.f32 %v1045, %v1055
      %v1060 = vadd.f32 %v1046, %v1056
      %v1061 = vadd.f32 %v1047, %v1057
      %s1062 = scalar_lea.vmem %s1, 40
      %v1063 = vld [vmem:[%s1062] sm:$0x1]
      %v1064 = vlaneseq
      %v1065 = vshrl.u32 %v1064, 7
      %v1066 = vsub.s32 0, %v1065
      %v1067 = vrot.slane %v1063, %v1066
      %v1068 = vmul.f32 %v1030, %v1067
      %v1069 = vmul.f32 %v1031, %v1067
      %v1070 = vmul.f32 %v1032, %v1067
      %v1071 = vmul.f32 %v1033, %v1067
      %v1072 = vadd.f32 %v1058, %v1068
      %v1073 = vadd.f32 %v1059, %v1069
      %v1074 = vadd.f32 %v1060, %v1070
      %v1075 = vadd.f32 %v1061, %v1071
      %s1076 = sadd.s32 %s330, 528
      %s1077 = scalar_lea.vmem %s318, %s1076
      %v1078 = vld [vmem:[%s1077] sm:$0xff]
      %v1079 = vld [vmem:[%s1077 + $0x10] sm:$0xff]
      %v1080 = vld [vmem:[%s1077 + $0x20] sm:$0xff]
      %v1081 = vld [vmem:[%s1077 + $0x30] sm:$0xff]
      %v1082 = vld [vmem:[%s1077 + $0x40] sm:$0xff]
      %v1083 = vld [vmem:[%s1077 + $0x50] sm:$0xff]
      %1090 = vrot.lane.b32.xlu0 %v1078, 4
      %v1091 = vpop.permute.xlu0 %1090
      %1092 = vrot.lane.b32.xlu0 %v1079, 4
      %v1093 = vpop.permute.xlu0 %1092
      %1094 = vrot.lane.b32.xlu0 %v1080, 4
      %v1095 = vpop.permute.xlu0 %1094
      %1096 = vrot.lane.b32.xlu0 %v1081, 4
      %v1097 = vpop.permute.xlu0 %1096
      %1098 = vrot.lane.b32.xlu0 %v1082, 4
      %v1099 = vpop.permute.xlu0 %1098
      %1100 = vrot.lane.b32.xlu0 %v1083, 4
      %v1101 = vpop.permute.xlu0 %1100
      %v1108 = vsel %vm367, %v1078, %v1091
      %v1109 = vsel %vm367, %v1079, %v1093
      %v1110 = vsel %vm367, %v1080, %v1095
      %v1111 = vsel %vm367, %v1081, %v1097
      %v1112 = vsel %vm367, %v1082, %v1099
      %v1113 = vsel %vm367, %v1083, %v1101
      %v1114 = vld [vmem:[%s1034 + $0x1] sm:$0x1]
      %v1115 = vlaneseq
      %v1116 = vshrl.u32 %v1115, 7
      %v1117 = vsub.s32 0, %v1116
      %v1118 = vrot.slane %v1114, %v1117
      %v1119 = vmul.f32 %v1108, %v1118
      %v1120 = vmul.f32 %v1109, %v1118
      %v1121 = vmul.f32 %v1110, %v1118
      %v1122 = vmul.f32 %v1111, %v1118
      %v1123 = vadd.f32 %v1072, %v1119
      %v1124 = vadd.f32 %v1073, %v1120
      %v1125 = vadd.f32 %v1074, %v1121
      %v1126 = vadd.f32 %v1075, %v1122
      %v1127 = vld [vmem:[%s1048 + $0x1] sm:$0x1]
      %v1128 = vlaneseq
      %v1129 = vshrl.u32 %v1128, 7
      %v1130 = vsub.s32 0, %v1129
      %v1131 = vrot.slane %v1127, %v1130
      %v1132 = vmul.f32 %v1109, %v1131
      %v1133 = vmul.f32 %v1110, %v1131
      %v1134 = vmul.f32 %v1111, %v1131
      %v1135 = vmul.f32 %v1112, %v1131
      %v1136 = vadd.f32 %v1123, %v1132
      %v1137 = vadd.f32 %v1124, %v1133
      %v1138 = vadd.f32 %v1125, %v1134
      %v1139 = vadd.f32 %v1126, %v1135
      %v1140 = vld [vmem:[%s1062 + $0x1] sm:$0x1]
      %v1141 = vlaneseq
      %v1142 = vshrl.u32 %v1141, 7
      %v1143 = vsub.s32 0, %v1142
      %v1144 = vrot.slane %v1140, %v1143
      %v1145 = vmul.f32 %v1110, %v1144
      %v1146 = vmul.f32 %v1111, %v1144
      %v1147 = vmul.f32 %v1112, %v1144
      %v1148 = vmul.f32 %v1113, %v1144
      %v1149 = vadd.f32 %v1136, %v1145
      %v1150 = vadd.f32 %v1137, %v1146
      %v1151 = vadd.f32 %v1138, %v1147
      %v1152 = vadd.f32 %v1139, %v1148
      %v1153 = vld [vmem:[%s997 + $0x1] sm:$0xff]
      %v1154 = vld [vmem:[%s997 + $0x11] sm:$0xff]
      %v1155 = vld [vmem:[%s997 + $0x21] sm:$0xff]
      %v1156 = vld [vmem:[%s997 + $0x31] sm:$0xff]
      %v1157 = vld [vmem:[%s997 + $0x41] sm:$0xff]
      %v1158 = vld [vmem:[%s997 + $0x51] sm:$0xff]
      %1165 = vrot.lane.b32.xlu0 %v1153, 4
      %v1166 = vpop.permute.xlu0 %1165
      %1167 = vrot.lane.b32.xlu0 %v1154, 4
      %v1168 = vpop.permute.xlu0 %1167
      %1169 = vrot.lane.b32.xlu0 %v1155, 4
      %v1170 = vpop.permute.xlu0 %1169
      %1171 = vrot.lane.b32.xlu0 %v1156, 4
      %v1172 = vpop.permute.xlu0 %1171
      %1173 = vrot.lane.b32.xlu0 %v1157, 4
      %v1174 = vpop.permute.xlu0 %1173
      %1175 = vrot.lane.b32.xlu0 %v1158, 4
      %v1176 = vpop.permute.xlu0 %1175
      %v1183 = vsel %vm367, %v1153, %v1166
      %v1184 = vsel %vm367, %v1154, %v1168
      %v1185 = vsel %vm367, %v1155, %v1170
      %v1186 = vsel %vm367, %v1156, %v1172
      %v1187 = vsel %vm367, %v1157, %v1174
      %v1188 = vsel %vm367, %v1158, %v1176
      %v1189 = vld [vmem:[%s1034 + $0x2] sm:$0x1]
      %v1190 = vlaneseq
      %v1191 = vshrl.u32 %v1190, 7
      %v1192 = vsub.s32 0, %v1191
      %v1193 = vrot.slane %v1189, %v1192
      %v1194 = vmul.f32 %v1183, %v1193
      %v1195 = vmul.f32 %v1184, %v1193
      %v1196 = vmul.f32 %v1185, %v1193
      %v1197 = vmul.f32 %v1186, %v1193
      %v1198 = vadd.f32 %v1149, %v1194
      %v1199 = vadd.f32 %v1150, %v1195
      %v1200 = vadd.f32 %v1151, %v1196
      %v1201 = vadd.f32 %v1152, %v1197
      %v1202 = vld [vmem:[%s1048 + $0x2] sm:$0x1]
      %v1203 = vlaneseq
      %v1204 = vshrl.u32 %v1203, 7
      %v1205 = vsub.s32 0, %v1204
      %v1206 = vrot.slane %v1202, %v1205
      %v1207 = vmul.f32 %v1184, %v1206
      %v1208 = vmul.f32 %v1185, %v1206
      %v1209 = vmul.f32 %v1186, %v1206
      %v1210 = vmul.f32 %v1187, %v1206
      %v1211 = vadd.f32 %v1198, %v1207
      %v1212 = vadd.f32 %v1199, %v1208
      %v1213 = vadd.f32 %v1200, %v1209
      %v1214 = vadd.f32 %v1201, %v1210
      %v1215 = vld [vmem:[%s1062 + $0x2] sm:$0x1]
      %v1216 = vlaneseq
      %v1217 = vshrl.u32 %v1216, 7
      %v1218 = vsub.s32 0, %v1217
      %v1219 = vrot.slane %v1215, %v1218
      %v1220 = vmul.f32 %v1185, %v1219
      %v1221 = vmul.f32 %v1186, %v1219
      %v1222 = vmul.f32 %v1187, %v1219
      %v1223 = vmul.f32 %v1188, %v1219
      %v1224 = vadd.f32 %v1211, %v1220
      %v1225 = vadd.f32 %v1212, %v1221
      %v1226 = vadd.f32 %v1213, %v1222
      %v1227 = vadd.f32 %v1214, %v1223
      %v1228 = vld [vmem:[%s1077 + $0x1] sm:$0xff]
      %v1229 = vld [vmem:[%s1077 + $0x11] sm:$0xff]
      %v1230 = vld [vmem:[%s1077 + $0x21] sm:$0xff]
      %v1231 = vld [vmem:[%s1077 + $0x31] sm:$0xff]
      %v1232 = vld [vmem:[%s1077 + $0x41] sm:$0xff]
      %v1233 = vld [vmem:[%s1077 + $0x51] sm:$0xff]
      %1240 = vrot.lane.b32.xlu0 %v1228, 4
      %v1241 = vpop.permute.xlu0 %1240
      %1242 = vrot.lane.b32.xlu0 %v1229, 4
      %v1243 = vpop.permute.xlu0 %1242
      %1244 = vrot.lane.b32.xlu0 %v1230, 4
      %v1245 = vpop.permute.xlu0 %1244
      %1246 = vrot.lane.b32.xlu0 %v1231, 4
      %v1247 = vpop.permute.xlu0 %1246
      %1248 = vrot.lane.b32.xlu0 %v1232, 4
      %v1249 = vpop.permute.xlu0 %1248
      %1250 = vrot.lane.b32.xlu0 %v1233, 4
      %v1251 = vpop.permute.xlu0 %1250
      %v1258 = vsel %vm367, %v1228, %v1241
      %v1259 = vsel %vm367, %v1229, %v1243
      %v1260 = vsel %vm367, %v1230, %v1245
      %v1261 = vsel %vm367, %v1231, %v1247
      %v1262 = vsel %vm367, %v1232, %v1249
      %v1263 = vsel %vm367, %v1233, %v1251
      %v1264 = vld [vmem:[%s1034 + $0x3] sm:$0x1]
      %v1265 = vlaneseq
      %v1266 = vshrl.u32 %v1265, 7
      %v1267 = vsub.s32 0, %v1266
      %v1268 = vrot.slane %v1264, %v1267
      %v1269 = vmul.f32 %v1258, %v1268
      %v1270 = vmul.f32 %v1259, %v1268
      %v1271 = vmul.f32 %v1260, %v1268
      %v1272 = vmul.f32 %v1261, %v1268
      %v1273 = vadd.f32 %v1224, %v1269
      %v1274 = vadd.f32 %v1225, %v1270
      %v1275 = vadd.f32 %v1226, %v1271
      %v1276 = vadd.f32 %v1227, %v1272
      %v1277 = vld [vmem:[%s1048 + $0x3] sm:$0x1]
      %v1278 = vlaneseq
      %v1279 = vshrl.u32 %v1278, 7
      %v1280 = vsub.s32 0, %v1279
      %v1281 = vrot.slane %v1277, %v1280
      %v1282 = vmul.f32 %v1259, %v1281
      %v1283 = vmul.f32 %v1260, %v1281
      %v1284 = vmul.f32 %v1261, %v1281
      %v1285 = vmul.f32 %v1262, %v1281
      %v1286 = vadd.f32 %v1273, %v1282
      %v1287 = vadd.f32 %v1274, %v1283
      %v1288 = vadd.f32 %v1275, %v1284
      %v1289 = vadd.f32 %v1276, %v1285
      %v1290 = vld [vmem:[%s1062 + $0x3] sm:$0x1]
      %v1291 = vlaneseq
      %v1292 = vshrl.u32 %v1291, 7
      %v1293 = vsub.s32 0, %v1292
      %v1294 = vrot.slane %v1290, %v1293
      %v1295 = vmul.f32 %v1260, %v1294
      %v1296 = vmul.f32 %v1261, %v1294
      %v1297 = vmul.f32 %v1262, %v1294
      %v1298 = vmul.f32 %v1263, %v1294
      %v1299 = vadd.f32 %v1286, %v1295
      %v1300 = vadd.f32 %v1287, %v1296
      %v1301 = vadd.f32 %v1288, %v1297
      %v1302 = vadd.f32 %v1289, %v1298
      %v1303 = vld [vmem:[%s997 + $0x2] sm:$0xff]
      %v1304 = vld [vmem:[%s997 + $0x12] sm:$0xff]
      %v1305 = vld [vmem:[%s997 + $0x22] sm:$0xff]
      %v1306 = vld [vmem:[%s997 + $0x32] sm:$0xff]
      %v1307 = vld [vmem:[%s997 + $0x42] sm:$0xff]
      %v1308 = vld [vmem:[%s997 + $0x52] sm:$0xff]
      %1315 = vrot.lane.b32.xlu0 %v1303, 4
      %v1316 = vpop.permute.xlu0 %1315
      %1317 = vrot.lane.b32.xlu0 %v1304, 4
      %v1318 = vpop.permute.xlu0 %1317
      %1319 = vrot.lane.b32.xlu0 %v1305, 4
      %v1320 = vpop.permute.xlu0 %1319
      %1321 = vrot.lane.b32.xlu0 %v1306, 4
      %v1322 = vpop.permute.xlu0 %1321
      %1323 = vrot.lane.b32.xlu0 %v1307, 4
      %v1324 = vpop.permute.xlu0 %1323
      %1325 = vrot.lane.b32.xlu0 %v1308, 4
      %v1326 = vpop.permute.xlu0 %1325
      %v1333 = vsel %vm367, %v1303, %v1316
      %v1334 = vsel %vm367, %v1304, %v1318
      %v1335 = vsel %vm367, %v1305, %v1320
      %v1336 = vsel %vm367, %v1306, %v1322
      %v1337 = vsel %vm367, %v1307, %v1324
      %v1338 = vsel %vm367, %v1308, %v1326
      %v1339 = vld [vmem:[%s1034 + $0x4] sm:$0x1]
      %v1340 = vlaneseq
      %v1341 = vshrl.u32 %v1340, 7
      %v1342 = vsub.s32 0, %v1341
      %v1343 = vrot.slane %v1339, %v1342
      %v1344 = vmul.f32 %v1333, %v1343
      %v1345 = vmul.f32 %v1334, %v1343
      %v1346 = vmul.f32 %v1335, %v1343
      %v1347 = vmul.f32 %v1336, %v1343
      %v1348 = vadd.f32 %v1299, %v1344
      %v1349 = vadd.f32 %v1300, %v1345
      %v1350 = vadd.f32 %v1301, %v1346
      %v1351 = vadd.f32 %v1302, %v1347
      %v1352 = vld [vmem:[%s1048 + $0x4] sm:$0x1]
      %v1353 = vlaneseq
      %v1354 = vshrl.u32 %v1353, 7
      %v1355 = vsub.s32 0, %v1354
      %v1356 = vrot.slane %v1352, %v1355
      %v1357 = vmul.f32 %v1334, %v1356
      %v1358 = vmul.f32 %v1335, %v1356
      %v1359 = vmul.f32 %v1336, %v1356
      %v1360 = vmul.f32 %v1337, %v1356
      %v1361 = vadd.f32 %v1348, %v1357
      %v1362 = vadd.f32 %v1349, %v1358
      %v1363 = vadd.f32 %v1350, %v1359
      %v1364 = vadd.f32 %v1351, %v1360
      %v1365 = vld [vmem:[%s1062 + $0x4] sm:$0x1]
      %v1366 = vlaneseq
      %v1367 = vshrl.u32 %v1366, 7
      %v1368 = vsub.s32 0, %v1367
      %v1369 = vrot.slane %v1365, %v1368
      %v1370 = vmul.f32 %v1335, %v1369
      %v1371 = vmul.f32 %v1336, %v1369
      %v1372 = vmul.f32 %v1337, %v1369
      %v1373 = vmul.f32 %v1338, %v1369
      %v1374 = vadd.f32 %v1361, %v1370
      %v1375 = vadd.f32 %v1362, %v1371
      %v1376 = vadd.f32 %v1363, %v1372
      %v1377 = vadd.f32 %v1364, %v1373
      %v1378 = vld [vmem:[%s1077 + $0x2] sm:$0xff]
      %v1379 = vld [vmem:[%s1077 + $0x12] sm:$0xff]
      %v1380 = vld [vmem:[%s1077 + $0x22] sm:$0xff]
      %v1381 = vld [vmem:[%s1077 + $0x32] sm:$0xff]
      %v1382 = vld [vmem:[%s1077 + $0x42] sm:$0xff]
      %v1383 = vld [vmem:[%s1077 + $0x52] sm:$0xff]
      %1390 = vrot.lane.b32.xlu0 %v1378, 4
      %v1391 = vpop.permute.xlu0 %1390
      %1392 = vrot.lane.b32.xlu0 %v1379, 4
      %v1393 = vpop.permute.xlu0 %1392
      %1394 = vrot.lane.b32.xlu0 %v1380, 4
      %v1395 = vpop.permute.xlu0 %1394
      %1396 = vrot.lane.b32.xlu0 %v1381, 4
      %v1397 = vpop.permute.xlu0 %1396
      %1398 = vrot.lane.b32.xlu0 %v1382, 4
      %v1399 = vpop.permute.xlu0 %1398
      %1400 = vrot.lane.b32.xlu0 %v1383, 4
      %v1401 = vpop.permute.xlu0 %1400
      %v1408 = vsel %vm367, %v1378, %v1391
      %v1409 = vsel %vm367, %v1379, %v1393
      %v1410 = vsel %vm367, %v1380, %v1395
      %v1411 = vsel %vm367, %v1381, %v1397
      %v1412 = vsel %vm367, %v1382, %v1399
      %v1413 = vsel %vm367, %v1383, %v1401
      %v1414 = vld [vmem:[%s1034 + $0x5] sm:$0x1]
      %v1415 = vlaneseq
      %v1416 = vshrl.u32 %v1415, 7
      %v1417 = vsub.s32 0, %v1416
      %v1418 = vrot.slane %v1414, %v1417
      %v1419 = vmul.f32 %v1408, %v1418
      %v1420 = vmul.f32 %v1409, %v1418
      %v1421 = vmul.f32 %v1410, %v1418
      %v1422 = vmul.f32 %v1411, %v1418
      %v1423 = vadd.f32 %v1374, %v1419
      %v1424 = vadd.f32 %v1375, %v1420
      %v1425 = vadd.f32 %v1376, %v1421
      %v1426 = vadd.f32 %v1377, %v1422
      %v1427 = vld [vmem:[%s1048 + $0x5] sm:$0x1]
      %v1428 = vlaneseq
      %v1429 = vshrl.u32 %v1428, 7
      %v1430 = vsub.s32 0, %v1429
      %v1431 = vrot.slane %v1427, %v1430
      %v1432 = vmul.f32 %v1409, %v1431
      %v1433 = vmul.f32 %v1410, %v1431
      %v1434 = vmul.f32 %v1411, %v1431
      %v1435 = vmul.f32 %v1412, %v1431
      %v1436 = vadd.f32 %v1423, %v1432
      %v1437 = vadd.f32 %v1424, %v1433
      %v1438 = vadd.f32 %v1425, %v1434
      %v1439 = vadd.f32 %v1426, %v1435
      %v1440 = vld [vmem:[%s1062 + $0x5] sm:$0x1]
      %v1441 = vlaneseq
      %v1442 = vshrl.u32 %v1441, 7
      %v1443 = vsub.s32 0, %v1442
      %v1444 = vrot.slane %v1440, %v1443
      %v1445 = vmul.f32 %v1410, %v1444
      %v1446 = vmul.f32 %v1411, %v1444
      %v1447 = vmul.f32 %v1412, %v1444
      %v1448 = vmul.f32 %v1413, %v1444
      %v1449 = vadd.f32 %v1436, %v1445
      %v1450 = vadd.f32 %v1437, %v1446
      %v1451 = vadd.f32 %v1438, %v1447
      %v1452 = vadd.f32 %v1439, %v1448
      %v1453 = vld [vmem:[%s997 + $0x3] sm:$0xff]
      %v1454 = vld [vmem:[%s997 + $0x13] sm:$0xff]
      %v1455 = vld [vmem:[%s997 + $0x23] sm:$0xff]
      %v1456 = vld [vmem:[%s997 + $0x33] sm:$0xff]
      %v1457 = vld [vmem:[%s997 + $0x43] sm:$0xff]
      %v1458 = vld [vmem:[%s997 + $0x53] sm:$0xff]
      %1465 = vrot.lane.b32.xlu0 %v1453, 4
      %v1466 = vpop.permute.xlu0 %1465
      %1467 = vrot.lane.b32.xlu0 %v1454, 4
      %v1468 = vpop.permute.xlu0 %1467
      %1469 = vrot.lane.b32.xlu0 %v1455, 4
      %v1470 = vpop.permute.xlu0 %1469
      %1471 = vrot.lane.b32.xlu0 %v1456, 4
      %v1472 = vpop.permute.xlu0 %1471
      %1473 = vrot.lane.b32.xlu0 %v1457, 4
      %v1474 = vpop.permute.xlu0 %1473
      %1475 = vrot.lane.b32.xlu0 %v1458, 4
      %v1476 = vpop.permute.xlu0 %1475
      %v1483 = vsel %vm367, %v1453, %v1466
      %v1484 = vsel %vm367, %v1454, %v1468
      %v1485 = vsel %vm367, %v1455, %v1470
      %v1486 = vsel %vm367, %v1456, %v1472
      %v1487 = vsel %vm367, %v1457, %v1474
      %v1488 = vsel %vm367, %v1458, %v1476
      %v1489 = vld [vmem:[%s1034 + $0x6] sm:$0x1]
      %v1490 = vlaneseq
      %v1491 = vshrl.u32 %v1490, 7
      %v1492 = vsub.s32 0, %v1491
      %v1493 = vrot.slane %v1489, %v1492
      %v1494 = vmul.f32 %v1483, %v1493
      %v1495 = vmul.f32 %v1484, %v1493
      %v1496 = vmul.f32 %v1485, %v1493
      %v1497 = vmul.f32 %v1486, %v1493
      %v1498 = vadd.f32 %v1449, %v1494
      %v1499 = vadd.f32 %v1450, %v1495
      %v1500 = vadd.f32 %v1451, %v1496
      %v1501 = vadd.f32 %v1452, %v1497
      %v1502 = vld [vmem:[%s1048 + $0x6] sm:$0x1]
      %v1503 = vlaneseq
      %v1504 = vshrl.u32 %v1503, 7
      %v1505 = vsub.s32 0, %v1504
      %v1506 = vrot.slane %v1502, %v1505
      %v1507 = vmul.f32 %v1484, %v1506
      %v1508 = vmul.f32 %v1485, %v1506
      %v1509 = vmul.f32 %v1486, %v1506
      %v1510 = vmul.f32 %v1487, %v1506
      %v1511 = vadd.f32 %v1498, %v1507
      %v1512 = vadd.f32 %v1499, %v1508
      %v1513 = vadd.f32 %v1500, %v1509
      %v1514 = vadd.f32 %v1501, %v1510
      %v1515 = vld [vmem:[%s1062 + $0x6] sm:$0x1]
      %v1516 = vlaneseq
      %v1517 = vshrl.u32 %v1516, 7
      %v1518 = vsub.s32 0, %v1517
      %v1519 = vrot.slane %v1515, %v1518
      %v1520 = vmul.f32 %v1485, %v1519
      %v1521 = vmul.f32 %v1486, %v1519
      %v1522 = vmul.f32 %v1487, %v1519
      %v1523 = vmul.f32 %v1488, %v1519
      %v1524 = vadd.f32 %v1511, %v1520
      %v1525 = vadd.f32 %v1512, %v1521
      %v1526 = vadd.f32 %v1513, %v1522
      %v1527 = vadd.f32 %v1514, %v1523
      %v1528 = vld [vmem:[%s2] sm:$0x1]
      %v1530 = vlaneseq
      %v1531 = vshrl.u32 %v1530, 7
      %v1532 = vsub.s32 0, %v1531
      %v1533 = vrot.slane %v1528, %v1532
      %v1535 = vadd.f32 %v1524, %v1533
      %v1536 = vadd.f32 %v1525, %v1533
      %v1537 = vadd.f32 %v1526, %v1533
      %v1538 = vadd.f32 %v1527, %v1533
      %vm1539 = vcmask 64512
      %1540 = vst.msk [vmem:[#allocation2] sm:$0xff] %vm1539, %v1535
      %1541 = vst.msk [vmem:[#allocation2 + $0x8] sm:$0xff] %vm1539, %v1536
      %1542 = vst.msk [vmem:[#allocation2 + $0x10] sm:$0xff] %vm1539, %v1537
      %1543 = vst.msk [vmem:[#allocation2 + $0x18] sm:$0xff] %vm1539, %v1538
      %v1544 = vld [vmem:[#allocation2] sm:$0xff]
      %v1545 = vld [vmem:[#allocation2 + $0x8] sm:$0xff]
      %v1546 = vld [vmem:[#allocation2 + $0x10] sm:$0xff]
      %v1547 = vld [vmem:[#allocation2 + $0x18] sm:$0xff]
      %v1548 = vld [vmem:[%s3] sm:$0xff]
      %v1549 = vld [vmem:[%s4] sm:$0x1]
      %v1551 = vlaneseq
      %v1552 = vshrl.u32 %v1551, 7
      %v1553 = vsub.s32 0, %v1552
      %v1554 = vrot.slane %v1549, %v1553
      %v1557 = vsel %vm1539, %v1544, 0
      %v1560 = vsel %vm1539, %v1545, 0
      %v1563 = vsel %vm1539, %v1546, 0
      %v1566 = vsel %vm1539, %v1547, 0
      %1568 = vmatprep.subr.mxu0 0.0
      %1569 = vmatpush1.msra.mxu0 0.0
      %1570 = vmatprep.subr.mxu0 0.0
      %1571 = vmatpush1.msra.mxu0 0.0
      %1572 = vmatprep.subr.mxu0 0.0
      %1573 = vmatpush1.msra.mxu0 0.0
      %1574 = vmatprep.subr.mxu0 0.0
      %1575 = vmatpush1.msra.mxu0 0.0
      %1576 = vmatprep.subr.mxu0 0.0
      %1577 = vmatpush1.msra.mxu0 0.0
      %1578 = vmatprep.subr.mxu0 0.0
      %1579 = vmatpush1.msra.mxu0 0.0
      %1580 = vmatprep.subr.mxu0 0.0
      %1581 = vmatpush1.msra.mxu0 0.0
      %1582 = vmatprep.subr.mxu0 0.0
      %1583 = vmatpush1.msra.mxu0 0.0
      %1584 = vmatprep.subr.mxu0 0.0
      %1585 = vmatpush1.msra.mxu0 0.0
      %1586 = vmatprep.subr.mxu0 0.0
      %1587 = vmatpush1.msra.mxu0 0.0
      %1588 = vmatprep.subr.mxu0 0.0
      %1589 = vmatpush1.msra.mxu0 0.0
      %1590 = vmatprep.subr.mxu0 0.0
      %1591 = vmatpush1.msra.mxu0 0.0
      %1592 = vmatprep.subr.mxu0 0.0
      %1593 = vmatpush1.msra.mxu0 0.0
      %1594 = vmatprep.subr.mxu0 0.0
      %1595 = vmatpush1.msra.mxu0 0.0
      %1596 = vmatprep.subr.mxu0 0.0
      %1597 = vmatpush1.msra.mxu0 0.0
      %1598 = vmatprep.subr.mxu0 0.0
      %1599 = vmatpush1.msra.mxu0 %v1548
      %1600 = vmatprep.subr.mxu0 0.0
      %1601 = vmatpush2.msra.mxu0 0.0
      %1602 = vmatprep.subr.mxu0 0.0
      %1603 = vmatpush2.msra.mxu0 0.0
      %1604 = vmatprep.subr.mxu0 0.0
      %1605 = vmatpush2.msra.mxu0 0.0
      %1606 = vmatprep.subr.mxu0 0.0
      %1607 = vmatpush2.msra.mxu0 0.0
      %1608 = vmatprep.subr.mxu0 0.0
      %1609 = vmatpush2.msra.mxu0 0.0
      %1610 = vmatprep.subr.mxu0 0.0
      %1611 = vmatpush2.msra.mxu0 0.0
      %1612 = vmatprep.subr.mxu0 0.0
      %1613 = vmatpush2.msra.mxu0 0.0
      %1614 = vmatprep.subr.mxu0 0.0
      %1615 = vmatpush2.msra.mxu0 0.0
      %1616 = vmatprep.subr.mxu0 0.0
      %1617 = vmatpush2.msra.mxu0 0.0
      %1618 = vmatprep.subr.mxu0 0.0
      %1619 = vmatpush2.msra.mxu0 0.0
      %1620 = vmatprep.subr.mxu0 0.0
      %1621 = vmatpush2.msra.mxu0 0.0
      %1622 = vmatprep.subr.mxu0 0.0
      %1623 = vmatpush2.msra.mxu0 0.0
      %1624 = vmatprep.subr.mxu0 0.0
      %1625 = vmatpush2.msra.mxu0 0.0
      %1626 = vmatprep.subr.mxu0 0.0
      %1627 = vmatpush2.msra.mxu0 0.0
      %1628 = vmatprep.subr.mxu0 0.0
      %1629 = vmatpush2.msra.mxu0 0.0
      %1630 = vmatprep.subr.mxu0 0.0
      %1631 = vmatpush2.msra.mxu0 0.0
      %1632 = vmatprep.mubr.f32.mxu0 0.0
      %1633 = vmatmul.mubr.f32.gmra.mxu0 %v1557
      %v1634 = vpop.f32.mrf.mxu0
      %v1635 = vadd.f32 %v1554, %v1634
      %v1636 = vpop.f32.mrf.mxu0
      %1637 = vmatprep.mubr.f32.mxu0 0.0
      %1638 = vmatmul.mubr.f32.gmra.mxu0 %v1560
      %v1639 = vpop.f32.mrf.mxu0
      %v1640 = vadd.f32 %v1554, %v1639
      %v1641 = vpop.f32.mrf.mxu0
      %1642 = vmatprep.mubr.f32.mxu0 0.0
      %1643 = vmatmul.mubr.f32.gmra.mxu0 %v1563
      %v1644 = vpop.f32.mrf.mxu0
      %v1645 = vadd.f32 %v1554, %v1644
      %v1646 = vpop.f32.mrf.mxu0
      %1647 = vmatprep.mubr.f32.mxu0 0.0
      %1648 = vmatmul.mubr.f32.gmra.mxu0 %v1566
      %v1649 = vpop.f32.mrf.mxu0
      %v1650 = vadd.f32 %v1554, %v1649
      %v1651 = vpop.f32.mrf.mxu0
      %1652 = vdwg.mxu0
      %v1653 = vmul.f32 %v1635, 0.5
      %v1654 = vmul.f32 %v1640, 0.5
      %v1655 = vmul.f32 %v1645, 0.5
      %v1656 = vmul.f32 %v1650, 0.5
      %v1657 = vmul.f32 %v1635, 0.70710677
      %v1658 = vmul.f32 %v1640, 0.70710677
      %v1659 = vmul.f32 %v1645, 0.70710677
      %v1660 = vmul.f32 %v1650, 0.70710677
      %v1661 = vand.u32 2147483647, %v1657
      %v1662 = vand.u32 2147483647, %v1658
      %v1663 = vand.u32 2147483647, %v1659
      %v1664 = vand.u32 2147483647, %v1660
      %v1665 = vmul.f32 %v1661, 0.3275911
      %v1666 = vmul.f32 %v1662, 0.3275911
      %v1667 = vmul.f32 %v1663, 0.3275911
      %v1668 = vmul.f32 %v1664, 0.3275911
      %v1669 = vadd.f32 %v1665, 1.0
      %v1670 = vadd.f32 %v1666, 1.0
      %v1671 = vadd.f32 %v1667, 1.0
      %v1672 = vadd.f32 %v1668, 1.0
      %v1673 = vrcp.pop %v1669
      %v1674 = vmul.f32 1.0, %v1673
      %v1675 = vrcp.pop %v1670
      %v1676 = vmul.f32 1.0, %v1675
      %v1677 = vrcp.pop %v1671
      %v1678 = vmul.f32 1.0, %v1677
      %v1679 = vrcp.pop %v1672
      %v1680 = vmul.f32 1.0, %v1679
      %v1681 = vmul.f32 %v1674, 1.0614054
      %v1682 = vmul.f32 %v1676, 1.0614054
      %v1683 = vmul.f32 %v1678, 1.0614054
      %v1684 = vmul.f32 %v1680, 1.0614054
      %v1685 = vadd.f32 %v1681, -1.4531521
      %v1686 = vadd.f32 %v1682, -1.4531521
      %v1687 = vadd.f32 %v1683, -1.4531521
      %v1688 = vadd.f32 %v1684, -1.4531521
      %v1689 = vmul.f32 %v1685, %v1674
      %v1690 = vmul.f32 %v1686, %v1676
      %v1691 = vmul.f32 %v1687, %v1678
      %v1692 = vmul.f32 %v1688, %v1680
      %v1693 = vadd.f32 %v1689, 1.4214138
      %v1694 = vadd.f32 %v1690, 1.4214138
      %v1695 = vadd.f32 %v1691, 1.4214138
      %v1696 = vadd.f32 %v1692, 1.4214138
      %v1697 = vmul.f32 %v1693, %v1674
      %v1698 = vmul.f32 %v1694, %v1676
      %v1699 = vmul.f32 %v1695, %v1678
      %v1700 = vmul.f32 %v1696, %v1680
      %v1701 = vadd.f32 %v1697, -0.28449672
      %v1702 = vadd.f32 %v1698, -0.28449672
      %v1703 = vadd.f32 %v1699, -0.28449672
      %v1704 = vadd.f32 %v1700, -0.28449672
      %v1705 = vmul.f32 %v1701, %v1674
      %v1706 = vmul.f32 %v1702, %v1676
      %v1707 = vmul.f32 %v1703, %v1678
      %v1708 = vmul.f32 %v1704, %v1680
      %v1709 = vadd.f32 %v1705, 0.2548296
      %v1710 = vadd.f32 %v1706, 0.2548296
      %v1711 = vadd.f32 %v1707, 0.2548296
      %v1712 = vadd.f32 %v1708, 0.2548296
      %v1713 = vmul.f32 %v1709, %v1674
      %v1714 = vmul.f32 %v1710, %v1676
      %v1715 = vmul.f32 %v1711, %v1678
      %v1716 = vmul.f32 %v1712, %v1680
      %v1717 = vsub.f32 0.0, %v1661
      %v1718 = vsub.f32 0.0, %v1662
      %v1719 = vsub.f32 0.0, %v1663
      %v1720 = vsub.f32 0.0, %v1664
      %v1721 = vmul.f32 %v1717, %v1661
      %v1722 = vmul.f32 %v1718, %v1662
      %v1723 = vmul.f32 %v1719, %v1663
      %v1724 = vmul.f32 %v1720, %v1664
      %v1725 = vmul.f32 %v1721, 1.442695
      %v1726 = vpow.pop %v1725
      %v1727 = vmul.f32 %v1722, 1.442695
      %v1728 = vpow.pop %v1727
      %v1729 = vmul.f32 %v1723, 1.442695
      %v1730 = vpow.pop %v1729
      %v1731 = vmul.f32 %v1724, 1.442695
      %v1732 = vpow.pop %v1731
      %v1733 = vmul.f32 %v1713, %v1726
      %v1734 = vmul.f32 %v1714, %v1728
      %v1735 = vmul.f32 %v1715, %v1730
      %v1736 = vmul.f32 %v1716, %v1732
      %v1737 = vsub.f32 1.0, %v1733
      %v1738 = vsub.f32 1.0, %v1734
      %v1739 = vsub.f32 1.0, %v1735
      %v1740 = vsub.f32 1.0, %v1736
      %vm1741 = vcmp.ge.f32.partialorder %v1657, 0.0
      %vm1742 = vcmp.ge.f32.partialorder %v1658, 0.0
      %vm1743 = vcmp.ge.f32.partialorder %v1659, 0.0
      %vm1744 = vcmp.ge.f32.partialorder %v1660, 0.0
      %v1745 = vsub.f32 0.0, %v1737
      %v1746 = vsub.f32 0.0, %v1738
      %v1747 = vsub.f32 0.0, %v1739
      %v1748 = vsub.f32 0.0, %v1740
      %v1749 = vsel %vm1741, %v1737, %v1745
      %v1750 = vsel %vm1742, %v1738, %v1746
      %v1751 = vsel %vm1743, %v1739, %v1747
      %v1752 = vsel %vm1744, %v1740, %v1748
      %v1753 = vadd.f32 %v1749, 1.0
      %v1754 = vadd.f32 %v1750, 1.0
      %v1755 = vadd.f32 %v1751, 1.0
      %v1756 = vadd.f32 %v1752, 1.0
      %v1757 = vmul.f32 %v1653, %v1753
      %v1758 = vmul.f32 %v1654, %v1754
      %v1759 = vmul.f32 %v1655, %v1755
      %v1760 = vmul.f32 %v1656, %v1756
      %v1761 = vld [vmem:[%s5] sm:$0xff]
      %v1762 = vld [vmem:[%s5 + $0x8] sm:$0xff]
      %v1763 = vld [vmem:[%s6] sm:$0x1]
      %v1765 = vlaneseq
      %v1766 = vshrl.u32 %v1765, 7
      %v1767 = vsub.s32 0, %v1766
      %v1768 = vrot.slane %v1763, %v1767
      %vm1770 = vcmask 130048
      %v1772 = vsel %vm1770, %v1757, 0
      %v1775 = vsel %vm1770, %v1758, 0
      %v1778 = vsel %vm1770, %v1759, 0
      %v1781 = vsel %vm1770, %v1760, 0
      %1783 = vmatprep.subr.mxu0 0.0
      %1784 = vmatpush1.msra.mxu0 0.0
      %1785 = vmatprep.subr.mxu0 0.0
      %1786 = vmatpush1.msra.mxu0 0.0
      %1787 = vmatprep.subr.mxu0 0.0
      %1788 = vmatpush1.msra.mxu0 0.0
      %1789 = vmatprep.subr.mxu0 0.0
      %1790 = vmatpush1.msra.mxu0 0.0
      %1791 = vmatprep.subr.mxu0 0.0
      %1792 = vmatpush1.msra.mxu0 0.0
      %1793 = vmatprep.subr.mxu0 0.0
      %1794 = vmatpush1.msra.mxu0 0.0
      %1795 = vmatprep.subr.mxu0 0.0
      %1796 = vmatpush1.msra.mxu0 0.0
      %1797 = vmatprep.subr.mxu0 0.0
      %1798 = vmatpush1.msra.mxu0 0.0
      %1799 = vmatprep.subr.mxu0 0.0
      %1800 = vmatpush1.msra.mxu0 0.0
      %1801 = vmatprep.subr.mxu0 0.0
      %1802 = vmatpush1.msra.mxu0 0.0
      %1803 = vmatprep.subr.mxu0 0.0
      %1804 = vmatpush1.msra.mxu0 0.0
      %1805 = vmatprep.subr.mxu0 0.0
      %1806 = vmatpush1.msra.mxu0 0.0
      %1807 = vmatprep.subr.mxu0 0.0
      %1808 = vmatpush1.msra.mxu0 0.0
      %1809 = vmatprep.subr.mxu0 0.0
      %1810 = vmatpush1.msra.mxu0 0.0
      %1811 = vmatprep.subr.mxu0 0.0
      %1812 = vmatpush1.msra.mxu0 %v1762
      %1813 = vmatprep.subr.mxu0 0.0
      %1814 = vmatpush1.msra.mxu0 %v1761
      %1815 = vmatprep.subr.mxu0 0.0
      %1816 = vmatpush2.msra.mxu0 0.0
      %1817 = vmatprep.subr.mxu0 0.0
      %1818 = vmatpush2.msra.mxu0 0.0
      %1819 = vmatprep.subr.mxu0 0.0
      %1820 = vmatpush2.msra.mxu0 0.0
      %1821 = vmatprep.subr.mxu0 0.0
      %1822 = vmatpush2.msra.mxu0 0.0
      %1823 = vmatprep.subr.mxu0 0.0
      %1824 = vmatpush2.msra.mxu0 0.0
      %1825 = vmatprep.subr.mxu0 0.0
      %1826 = vmatpush2.msra.mxu0 0.0
      %1827 = vmatprep.subr.mxu0 0.0
      %1828 = vmatpush2.msra.mxu0 0.0
      %1829 = vmatprep.subr.mxu0 0.0
      %1830 = vmatpush2.msra.mxu0 0.0
      %1831 = vmatprep.subr.mxu0 0.0
      %1832 = vmatpush2.msra.mxu0 0.0
      %1833 = vmatprep.subr.mxu0 0.0
      %1834 = vmatpush2.msra.mxu0 0.0
      %1835 = vmatprep.subr.mxu0 0.0
      %1836 = vmatpush2.msra.mxu0 0.0
      %1837 = vmatprep.subr.mxu0 0.0
      %1838 = vmatpush2.msra.mxu0 0.0
      %1839 = vmatprep.subr.mxu0 0.0
      %1840 = vmatpush2.msra.mxu0 0.0
      %1841 = vmatprep.subr.mxu0 0.0
      %1842 = vmatpush2.msra.mxu0 0.0
      %1843 = vmatprep.subr.mxu0 0.0
      %1844 = vmatpush2.msra.mxu0 0.0
      %1845 = vmatprep.subr.mxu0 0.0
      %1846 = vmatpush2.msra.mxu0 0.0
      %1847 = vmatprep.mubr.f32.mxu0 0.0
      %1848 = vmatmul.mubr.f32.gmra.mxu0 %v1772
      %v1849 = vpop.f32.mrf.mxu0
      %v1850 = vadd.f32 %v1768, %v1849
      %v1851 = vpop.f32.mrf.mxu0
      %1852 = vmatprep.mubr.f32.mxu0 0.0
      %1853 = vmatmul.mubr.f32.gmra.mxu0 %v1775
      %v1854 = vpop.f32.mrf.mxu0
      %v1855 = vadd.f32 %v1768, %v1854
      %v1856 = vpop.f32.mrf.mxu0
      %1857 = vmatprep.mubr.f32.mxu0 0.0
      %1858 = vmatmul.mubr.f32.gmra.mxu0 %v1778
      %v1859 = vpop.f32.mrf.mxu0
      %v1860 = vadd.f32 %v1768, %v1859
      %v1861 = vpop.f32.mrf.mxu0
      %1862 = vmatprep.mubr.f32.mxu0 0.0
      %1863 = vmatmul.mubr.f32.gmra.mxu0 %v1781
      %v1864 = vpop.f32.mrf.mxu0
      %v1865 = vadd.f32 %v1768, %v1864
      %v1866 = vpop.f32.mrf.mxu0
      %1867 = vdwg.mxu0
      %v1868 = vld [vmem:[%s7] sm:$0xff]
      %1869 = vmatprep.subr.mxu0 0.0
      %1870 = vmatpush1.msra.mxu0 0.0
      %1871 = vmatprep.subr.mxu0 0.0
      %1872 = vmatpush1.msra.mxu0 0.0
      %1873 = vmatprep.subr.mxu0 0.0
      %1874 = vmatpush1.msra.mxu0 0.0
      %1875 = vmatprep.subr.mxu0 0.0
      %1876 = vmatpush1.msra.mxu0 0.0
      %1877 = vmatprep.subr.mxu0 0.0
      %1878 = vmatpush1.msra.mxu0 0.0
      %1879 = vmatprep.subr.mxu0 0.0
      %1880 = vmatpush1.msra.mxu0 0.0
      %1881 = vmatprep.subr.mxu0 0.0
      %1882 = vmatpush1.msra.mxu0 0.0
      %1883 = vmatprep.subr.mxu0 0.0
      %1884 = vmatpush1.msra.mxu0 0.0
      %1885 = vmatprep.subr.mxu0 0.0
      %1886 = vmatpush1.msra.mxu0 0.0
      %1887 = vmatprep.subr.mxu0 0.0
      %1888 = vmatpush1.msra.mxu0 0.0
      %1889 = vmatprep.subr.mxu0 0.0
      %1890 = vmatpush1.msra.mxu0 0.0
      %1891 = vmatprep.subr.mxu0 0.0
      %1892 = vmatpush1.msra.mxu0 0.0
      %1893 = vmatprep.subr.mxu0 0.0
      %1894 = vmatpush1.msra.mxu0 0.0
      %1895 = vmatprep.subr.mxu0 0.0
      %1896 = vmatpush1.msra.mxu0 0.0
      %1897 = vmatprep.subr.mxu0 0.0
      %1898 = vmatpush1.msra.mxu0 0.0
      %1899 = vmatprep.subr.mxu0 0.0
      %1900 = vmatpush1.msra.mxu0 %v1868
      %1901 = vmatprep.subr.mxu0 0.0
      %1902 = vmatpush2.msra.mxu0 0.0
      %1903 = vmatprep.subr.mxu0 0.0
      %1904 = vmatpush2.msra.mxu0 0.0
      %1905 = vmatprep.subr.mxu0 0.0
      %1906 = vmatpush2.msra.mxu0 0.0
      %1907 = vmatprep.subr.mxu0 0.0
      %1908 = vmatpush2.msra.mxu0 0.0
      %1909 = vmatprep.subr.mxu0 0.0
      %1910 = vmatpush2.msra.mxu0 0.0
      %1911 = vmatprep.subr.mxu0 0.0
      %1912 = vmatpush2.msra.mxu0 0.0
      %1913 = vmatprep.subr.mxu0 0.0
      %1914 = vmatpush2.msra.mxu0 0.0
      %1915 = vmatprep.subr.mxu0 0.0
      %1916 = vmatpush2.msra.mxu0 0.0
      %1917 = vmatprep.subr.mxu0 0.0
      %1918 = vmatpush2.msra.mxu0 0.0
      %1919 = vmatprep.subr.mxu0 0.0
      %1920 = vmatpush2.msra.mxu0 0.0
      %1921 = vmatprep.subr.mxu0 0.0
      %1922 = vmatpush2.msra.mxu0 0.0
      %1923 = vmatprep.subr.mxu0 0.0
      %1924 = vmatpush2.msra.mxu0 0.0
      %1925 = vmatprep.subr.mxu0 0.0
      %1926 = vmatpush2.msra.mxu0 0.0
      %1927 = vmatprep.subr.mxu0 0.0
      %1928 = vmatpush2.msra.mxu0 0.0
      %1929 = vmatprep.subr.mxu0 0.0
      %1930 = vmatpush2.msra.mxu0 0.0
      %1931 = vmatprep.subr.mxu0 0.0
      %1932 = vmatpush2.msra.mxu0 0.0
      %1933 = vmatprep.mubr.f32.mxu0 0.0
      %1934 = vmatmul.mubr.f32.gmra.mxu0 %v1557
      %v1935 = vpop.f32.mrf.mxu0
      %v1936 = vadd.f32 %v1850, %v1935
      %v1937 = vpop.f32.mrf.mxu0
      %1938 = vmatprep.mubr.f32.mxu0 0.0
      %1939 = vmatmul.mubr.f32.gmra.mxu0 %v1560
      %v1940 = vpop.f32.mrf.mxu0
      %v1941 = vadd.f32 %v1855, %v1940
      %v1942 = vpop.f32.mrf.mxu0
      %1943 = vmatprep.mubr.f32.mxu0 0.0
      %1944 = vmatmul.mubr.f32.gmra.mxu0 %v1563
      %v1945 = vpop.f32.mrf.mxu0
      %v1946 = vadd.f32 %v1860, %v1945
      %v1947 = vpop.f32.mrf.mxu0
      %1948 = vmatprep.mubr.f32.mxu0 0.0
      %1949 = vmatmul.mubr.f32.gmra.mxu0 %v1566
      %v1950 = vpop.f32.mrf.mxu0
      %v1951 = vadd.f32 %v1865, %v1950
      %v1952 = vpop.f32.mrf.mxu0
      %1953 = vdwg.mxu0
      %1954 = vst.msk [vmem:[%s327] sm:$0xff] %vm1539, %v1936
      %1955 = vst.msk [vmem:[%s327 + $0x8] sm:$0xff] %vm1539, %v1941
      %1956 = vst.msk [vmem:[%s327 + $0x10] sm:$0xff] %vm1539, %v1946
      %1957 = vst.msk [vmem:[%s327 + $0x18] sm:$0xff] %vm1539, %v1951
      %s1958 = smul.u32 4, %s24
      %p1959 = scmp.lt.s32.totalorder %s23, 1
      %s1960 = scalar_select %p1959, %s23, 1
      %p1961 = scmp.lt.s32.totalorder %s1958, 7
      %s1962 = scalar_select %p1961, %s1958, 7
      %s1963 = smul.addr %s1960, 8
      %s1964 = sadd.s32 %s1962, %s1963
      %s1965 = smul.addr %s1964, 8
      %s1966 = scalar_lea.vmem %s8, %s1965
      // Predicated region
      $region53: #{tpu_custom_call.1} parent=51 // pred_check
        %p1967 = pneg %p224
      $region54: #{tpu_custom_call.1} parent=51 // pred_check_branch
        %1969 = sbr.rel (%p1967) target = $region56
      $region55: #{tpu_custom_call.1} parent=51 // pred_region
        %s1970 = smul.u32 4, %s24
      $region56: #{tpu_custom_call.1} parent=51 // pred_fallthru
        _
    $region52: #{tpu_custom_call.1} parent=5 // pred_fallthru
      _
    %p1971 = scmp.le.s32.totalorder 2, %s14
    // Predicated region
    $region57: #{tpu_custom_call.1} parent=5 // pred_check
      %p1972 = pneg %p1971
    $region58: #{tpu_custom_call.1} parent=5 // pred_check_branch
      %1974 = sbr.rel (%p1972) target = $region60
    $region59: #{tpu_custom_call.1} parent=5 // pred_region
      %s1975 = ssub.s32 %s14, 2
      // Predicated region
      $region61: #{tpu_custom_call.1} parent=59 // pred_check
        %p1976 = pneg %p230
      $region62: #{tpu_custom_call.1} parent=59 // pred_check_branch
        %1978 = sbr.rel (%p1976) target = $region64
      $region63: #{tpu_custom_call.1} parent=59 // pred_region
        %s1979 = smul.u32 4, %s26
        %p1980 = scmp.lt.s32.totalorder %s25, 1
        %s1981 = scalar_select %p1980, %s25, 1
        %p1982 = scmp.lt.s32.totalorder %s1979, 7
        %s1983 = scalar_select %p1982, %s1979, 7
        %s1984 = smul.addr %s1981, 8
        %s1985 = sadd.s32 %s1983, %s1984
        %s1986 = smul.addr %s1985, 8
        %s1987 = scalar_lea.vmem %s8, %s1986
      $region64: #{tpu_custom_call.1} parent=59 // pred_fallthru
        _
    $region60: #{tpu_custom_call.1} parent=5 // pred_fallthru
      _
  $region6: #{tpu_custom_call.1} parent=0 // loop_footer
    %s18 = sadd.s32 1, %s14
  $region7: #{tpu_custom_call.1} parent=0 // loop_footer_branch
    %13 = sbr.rel target = $region3
  $region8: #{tpu_custom_call.1} parent=0 // loop_exit
    _

</llo_original>
